<compile_context>
chip_gen: v7x
topology: tpu7x:2x2x1
jax: 0.10.0
libtpu: 0.0.40
codegen_flags: <defaults>
</compile_context>

<pallas_src>
import functools

import numpy as np
import jax
import jax.numpy as jnp
from jax.experimental import pallas as pl
from jax.experimental.pallas import tpu as pltpu


def _x_attention_kernel(x_ref, c_ref, cos_ref, sin_ref, rot_ref,
                        wq_ref, bq_ref, wv_ref, bv_ref, wo_ref, bo_ref,
                        out_ref, h_scratch, *, n_heads, d_head):
    x = x_ref[0]                       # (S, INP) f32
    c = c_ref[0]                       # (S, INP) f32
    cdt = wq_ref.dtype                 # MXU input dtype (f32 or bf16)

    # ---- projections (MXU, f32 accumulation; K projection is dead) ----------
    q = jnp.dot(c.astype(cdt), wq_ref[...],
                preferred_element_type=jnp.float32) + bq_ref[...]
    v = jnp.dot(x.astype(cdt), wv_ref[...],
                preferred_element_type=jnp.float32) + bv_ref[...]

    # ---- rotary embedding on q at full (S, HID) width ------------------------
    # neg_half(q) per head == q @ R (signed block permutation, exact).
    # cos/sin tables are tiled to (S, HID) and carry the attention scale.
    q_swap = jnp.dot(q.astype(cdt), rot_ref[...],
                     preferred_element_type=jnp.float32)
    q = q * cos_ref[...] + q_swap * sin_ref[...]

    qc = q.astype(cdt)
    vc = v.astype(cdt)

    # ---- per-head attention --------------------------------------------------
    # n_heads is small & static.  Each head's (S, d_head) result goes straight
    # into its column slice of the VMEM scratch: no list of partials, no final
    # concatenate; the (S, S) score matrix dies as soon as the store retires.
    for h in range(n_heads):
        lo = h * d_head
        qh = qc[:, lo:lo + d_head]
        vh = vc[:, lo:lo + d_head]

        s = jnp.dot(qh, vh.T, preferred_element_type=jnp.float32)   # scale pre-folded
        s = jnp.exp(s - jnp.max(s, axis=-1, keepdims=True))
        att = s * pl.reciprocal(jnp.sum(s, axis=-1, keepdims=True), approx=True)

        h_scratch[:, lo:lo + d_head] = jnp.dot(
            att.astype(cdt), vh, preferred_element_type=jnp.float32)

    # ---- output projection + residual ---------------------------------------
    o = jnp.dot(h_scratch[...].astype(cdt), wo_ref[...],
                preferred_element_type=jnp.float32) + bo_ref[...]
    out_ref[0] = o + x


def x_attention(x, c, params, *, n_heads, d_head, base=10000.0,
                matmul_dtype=jnp.bfloat16):
    """Pallas-backed forward of X_Attention.  x, c: (B, S, INP) float32."""
    B, S, INP = x.shape
    HID = n_heads * d_head
    scale = float(d_head) ** -0.5
    half = d_head // 2

    wq, bq, wk, bk, wv, bv, wo, bo = params
    del wk, bk   # dead parameters: the reference score einsum uses q and v, never k.

    # RoPE tables, tiled to full (S, HID) width, with the attention scale folded in.
    theta = 1.0 / (base ** (np.arange(0, d_head, 2, dtype=np.float32) / d_head))
    idx_theta = np.arange(S, dtype=np.float32)[:, None] * theta[None, :]   # (S, d/2)
    idx_theta2 = np.concatenate([idx_theta, idx_theta], axis=1)            # (S, d)
    cos_s = jnp.asarray(np.tile(np.cos(idx_theta2), (1, n_heads)) * scale)  # (S, HID)
    sin_s = jnp.asarray(np.tile(np.sin(idx_theta2), (1, n_heads)) * scale)  # (S, HID)

    # Signed block-diagonal permutation implementing per-head rotate-half:
    #   (q @ R)[:, h*d + j] = -q[:, h*d + j + half]  (j <  half)
    #                       =  q[:, h*d + j - half]  (j >= half)
    r_head = np.zeros((d_head, d_head), np.float32)
    r_head[half:, :half] = -np.eye(half, dtype=np.float32)
    r_head[:half, half:] = np.eye(half, dtype=np.float32)
    rot = jnp.asarray(np.kron(np.eye(n_heads, dtype=np.float32), r_head))  # (HID, HID)

    mdt = jnp.dtype(matmul_dtype)
    if mdt != jnp.float32:
        # Halve weight DMA bytes; biases/tables stay f32 (added after the f32 MXU
        # accumulation; elementwise / softmax math stays f32, incl. on v5e's VPU).
        wq, wv, wo, rot = (a.astype(mdt) for a in (wq, wv, wo, rot))

    kernel = functools.partial(_x_attention_kernel, n_heads=n_heads, d_head=d_head)

    def resident(shape):
        return pl.BlockSpec(shape, lambda b, _n=len(shape): (0,) * _n)

    grid_spec = pltpu.PrefetchScalarGridSpec(
        num_scalar_prefetch=0,
        grid=(B,),
        in_specs=[
            pl.BlockSpec((1, S, INP), lambda b: (b, 0, 0)),   # x
            pl.BlockSpec((1, S, INP), lambda b: (b, 0, 0)),   # c
            resident((S, HID)), resident((S, HID)),           # cos*scale, sin*scale
            resident((HID, HID)),                             # rotate-half matrix
            resident((INP, HID)), resident((1, HID)),         # Q weight / bias
            resident((INP, HID)), resident((1, HID)),         # V weight / bias
            resident((HID, INP)), resident((1, INP)),         # output weight / bias
        ],
        out_specs=pl.BlockSpec((1, S, INP), lambda b: (b, 0, 0)),
        scratch_shapes=[pltpu.VMEM((S, HID), jnp.float32)],
    )

    # Rough per-step VMEM footprint (double-buffered activation blocks, resident
    # weights/tables, per-head temporaries), with margin; clamp to a safe range.
    w_bytes = jnp.dtype(mdt).itemsize
    est = 4 * (6 * S * INP + 6 * S * HID + n_heads * S * S) \
        + 2 * w_bytes * (2 * INP * HID + HID * INP + HID * HID)
    vmem_limit = int(min(64 * 1024 * 1024, max(32 * 1024 * 1024, 2 * est)))

    return pl.pallas_call(
        kernel,
        out_shape=jax.ShapeDtypeStruct((B, S, INP), jnp.float32),
        grid_spec=grid_spec,
        compiler_params=pltpu.CompilerParams(
            dimension_semantics=("parallel",),   # batch items are independent
            vmem_limit_bytes=vmem_limit,
        ),
    )(x, c, cos_s, sin_s, rot, wq, bq, wv, bv, wo, bo)


# ---------------- pure-JAX reference (mirrors the PyTorch module) ----------------
def x_attention_ref(x, c, params, *, n_heads, d_head, base=10000.0):
    wq, bq, wk, bk, wv, bv, wo, bo = params
    B, S, INP = x.shape
    HID = n_heads * d_head
    scale = float(d_head) ** -0.5

    theta = 1.0 / (base ** (jnp.arange(0, d_head, 2, dtype=jnp.float32) / d_head))
    idx_theta = jnp.arange(S, dtype=jnp.float32)[:, None] * theta[None, :]
    idx_theta2 = jnp.concatenate([idx_theta, idx_theta], axis=1)
    cos_t, sin_t = jnp.cos(idx_theta2), jnp.sin(idx_theta2)

    def rope(t):  # t: (B, S, H, D)
        half = d_head // 2
        neg = jnp.concatenate([-t[..., half:], t[..., :half]], axis=-1)
        return t * cos_t[None, :, None, :] + neg * sin_t[None, :, None, :]

    q = (c @ wq + bq).reshape(B, S, n_heads, d_head)
    v = (x @ wv + bv).reshape(B, S, n_heads, d_head)
    q = rope(q)
    att = jnp.einsum('bihd,bjhd->bhij', q, v) * scale
    att = jax.nn.softmax(att, axis=-1)
    h = jnp.einsum('bhij,bjhd->bihd', att, v).reshape(B, S, HID)
    return h @ wo + bo + x


if __name__ == "__main__":
    B, S, INP = 2, 8, 32
    HIDDEN = 32
    HEAD_DIM = 4                  # module arg `head_dim` == number of heads
    N_HEADS = HEAD_DIM
    D_HEAD = HIDDEN // HEAD_DIM   # per-head (rotary) dim

    key = jax.random.PRNGKey(0)
    ks = jax.random.split(key, 10)
    mk = lambda k, shp, s=0.1: jax.random.normal(k, shp, jnp.float32) * s

    params = (
        mk(ks[0], (INP, HIDDEN)), mk(ks[1], (1, HIDDEN)),   # Q
        mk(ks[2], (INP, HIDDEN)), mk(ks[3], (1, HIDDEN)),   # K (dead in forward math)
        mk(ks[4], (INP, HIDDEN)), mk(ks[5], (1, HIDDEN)),   # V
        mk(ks[6], (HIDDEN, INP)), mk(ks[7], (1, INP)),      # output
    )
    x = jax.random.normal(ks[8], (B, S, INP), jnp.float32)
    c = jax.random.normal(ks[9], (B, S, INP), jnp.float32)

    ref = x_attention_ref(x, c, params, n_heads=N_HEADS, d_head=D_HEAD)

    # Exact (f32 MXU-input) path: faithful to the f32 PyTorch module.
    out_f32 = x_attention(x, c, params, n_heads=N_HEADS, d_head=D_HEAD,
                          matmul_dtype=jnp.float32)
    out_f32 = jax.block_until_ready(out_f32)
    assert out_f32.shape == (B, S, INP)
    # small slack covers the approximate EUP reciprocal in the softmax
    assert jnp.allclose(out_f32, ref, atol=5e-3, rtol=5e-3), "f32 mismatch vs reference"

    # Default bf16 matmul-input path (recommended on v5e/v6e/v7x), f32 accumulation.
    out_bf16 = x_attention(x, c, params, n_heads=N_HEADS, d_head=D_HEAD)
    out_bf16 = jax.block_until_ready(out_bf16)
    assert jnp.allclose(out_bf16, ref, atol=5e-2, rtol=5e-2), "bf16 mismatch vs reference"

    print("KERNEL_OK")
</pallas_src>

<mosaic_0001>
module attributes {stable_mosaic.version = 11 : i64} {
  func.func @_x_attention_kernel(%arg0: i32, %arg1: memref<1x8x32xf32, #tpu.memory_space<vmem>>, %arg2: memref<1x8x32xf32, #tpu.memory_space<vmem>>, %arg3: memref<8x32xf32, #tpu.memory_space<vmem>>, %arg4: memref<8x32xf32, #tpu.memory_space<vmem>>, %arg5: memref<32x32xf32, #tpu.memory_space<vmem>>, %arg6: memref<32x32xf32, #tpu.memory_space<vmem>>, %arg7: memref<1x32xf32, #tpu.memory_space<vmem>>, %arg8: memref<32x32xf32, #tpu.memory_space<vmem>>, %arg9: memref<1x32xf32, #tpu.memory_space<vmem>>, %arg10: memref<32x32xf32, #tpu.memory_space<vmem>>, %arg11: memref<1x32xf32, #tpu.memory_space<vmem>>, %arg12: memref<1x8x32xf32, #tpu.memory_space<vmem>>, %arg13: memref<8x32xf32, #tpu.memory_space<vmem>>) attributes {dimension_semantics = [#tpu.dimension_semantics<parallel>], iteration_bounds = array<i64: 2>, scalar_prefetch = 0 : i64, scratch_operands = 1 : i64, tpu.core_type = #tpu.core_type<tc>, window_params = [{transform_indices = @transform_0, window_bounds = array<i64: 1, 8, 32>}, {transform_indices = @transform_1, window_bounds = array<i64: 1, 8, 32>}, {pipeline_mode = #tpu.pipeline_mode<synchronous>, transform_indices = @transform_2, window_bounds = array<i64: 8, 32>}, {pipeline_mode = #tpu.pipeline_mode<synchronous>, transform_indices = @transform_3, window_bounds = array<i64: 8, 32>}, {pipeline_mode = #tpu.pipeline_mode<synchronous>, transform_indices = @transform_4, window_bounds = array<i64: 32, 32>}, {pipeline_mode = #tpu.pipeline_mode<synchronous>, transform_indices = @transform_5, window_bounds = array<i64: 32, 32>}, {pipeline_mode = #tpu.pipeline_mode<synchronous>, transform_indices = @transform_6, window_bounds = array<i64: 1, 32>}, {pipeline_mode = #tpu.pipeline_mode<synchronous>, transform_indices = @transform_7, window_bounds = array<i64: 32, 32>}, {pipeline_mode = #tpu.pipeline_mode<synchronous>, transform_indices = @transform_8, window_bounds = array<i64: 1, 32>}, {pipeline_mode = #tpu.pipeline_mode<synchronous>, transform_indices = @transform_9, window_bounds = array<i64: 32, 32>}, {pipeline_mode = #tpu.pipeline_mode<synchronous>, transform_indices = @transform_10, window_bounds = array<i64: 1, 32>}, {transform_indices = @transform_11, window_bounds = array<i64: 1, 8, 32>}]} {
    %c0 = arith.constant 0 : index
    %c0_0 = arith.constant 0 : index
    %c0_1 = arith.constant 0 : index
    %0 = vector.load %arg1[%c0, %c0_0, %c0_1] : memref<1x8x32xf32, #tpu.memory_space<vmem>>, vector<1x8x32xf32>
    %1 = vector.shape_cast %0 : vector<1x8x32xf32> to vector<8x32xf32>
    %c0_2 = arith.constant 0 : index
    %c0_3 = arith.constant 0 : index
    %c0_4 = arith.constant 0 : index
    %2 = vector.load %arg2[%c0_2, %c0_3, %c0_4] : memref<1x8x32xf32, #tpu.memory_space<vmem>>, vector<1x8x32xf32>
    %3 = vector.shape_cast %2 : vector<1x8x32xf32> to vector<8x32xf32>
    %c0_5 = arith.constant 0 : index
    %c0_6 = arith.constant 0 : index
    %4 = vector.load %arg6[%c0_5, %c0_6] : memref<32x32xf32, #tpu.memory_space<vmem>>, vector<32x32xf32>
    %cst = arith.constant dense<0.000000e+00> : vector<8x32xf32>
    %5 = tpu.matmul %3, %4, %cst {dimension_numbers = #tpu.dot_dimension_numbers<[1], [0], [0], [1], [0, 0, 1, 1], [], []>} : vector<8x32xf32>, vector<32x32xf32>, vector<8x32xf32> -> vector<8x32xf32>
    %c0_7 = arith.constant 0 : index
    %c0_8 = arith.constant 0 : index
    %6 = vector.load %arg7[%c0_7, %c0_8] : memref<1x32xf32, #tpu.memory_space<vmem>>, vector<1x32xf32>
    %7 = vector.broadcast %6 : vector<1x32xf32> to vector<8x32xf32>
    %8 = arith.addf %5, %7 : vector<8x32xf32>
    %c0_9 = arith.constant 0 : index
    %c0_10 = arith.constant 0 : index
    %9 = vector.load %arg8[%c0_9, %c0_10] : memref<32x32xf32, #tpu.memory_space<vmem>>, vector<32x32xf32>
    %cst_11 = arith.constant dense<0.000000e+00> : vector<8x32xf32>
    %10 = tpu.matmul %1, %9, %cst_11 {dimension_numbers = #tpu.dot_dimension_numbers<[1], [0], [0], [1], [0, 0, 1, 1], [], []>} : vector<8x32xf32>, vector<32x32xf32>, vector<8x32xf32> -> vector<8x32xf32>
    %c0_12 = arith.constant 0 : index
    %c0_13 = arith.constant 0 : index
    %11 = vector.load %arg9[%c0_12, %c0_13] : memref<1x32xf32, #tpu.memory_space<vmem>>, vector<1x32xf32>
    %12 = vector.broadcast %11 : vector<1x32xf32> to vector<8x32xf32>
    %13 = arith.addf %10, %12 : vector<8x32xf32>
    %c0_14 = arith.constant 0 : index
    %c0_15 = arith.constant 0 : index
    %14 = vector.load %arg5[%c0_14, %c0_15] : memref<32x32xf32, #tpu.memory_space<vmem>>, vector<32x32xf32>
    %cst_16 = arith.constant dense<0.000000e+00> : vector<8x32xf32>
    %15 = tpu.matmul %8, %14, %cst_16 {dimension_numbers = #tpu.dot_dimension_numbers<[1], [0], [0], [1], [0, 0, 1, 1], [], []>} : vector<8x32xf32>, vector<32x32xf32>, vector<8x32xf32> -> vector<8x32xf32>
    %c0_17 = arith.constant 0 : index
    %c0_18 = arith.constant 0 : index
    %16 = vector.load %arg3[%c0_17, %c0_18] : memref<8x32xf32, #tpu.memory_space<vmem>>, vector<8x32xf32>
    %17 = arith.mulf %8, %16 : vector<8x32xf32>
    %c0_19 = arith.constant 0 : index
    %c0_20 = arith.constant 0 : index
    %18 = vector.load %arg4[%c0_19, %c0_20] : memref<8x32xf32, #tpu.memory_space<vmem>>, vector<8x32xf32>
    %19 = arith.mulf %15, %18 : vector<8x32xf32>
    %20 = arith.addf %17, %19 : vector<8x32xf32>
    %21 = vector.extract_strided_slice %20 {offsets = [0, 0], sizes = [8, 8], strides = [1, 1]} : vector<8x32xf32> to vector<8x8xf32>
    %22 = vector.extract_strided_slice %13 {offsets = [0, 0], sizes = [8, 8], strides = [1, 1]} : vector<8x32xf32> to vector<8x8xf32>
    %23 = tpu.transpose %22, [1, 0] : vector<8x8xf32> -> vector<8x8xf32>
    %cst_21 = arith.constant dense<0.000000e+00> : vector<8x8xf32>
    %24 = tpu.matmul %21, %23, %cst_21 {dimension_numbers = #tpu.dot_dimension_numbers<[1], [0], [0], [1], [0, 0, 1, 1], [], []>} : vector<8x8xf32>, vector<8x8xf32>, vector<8x8xf32> -> vector<8x8xf32>
    %cst_22 = arith.constant dense<0xFF800000> : vector<8xf32>
    %25 = vector.multi_reduction <maximumf>, %24, %cst_22 [1] : vector<8x8xf32> to vector<8xf32>
    %26 = vector.shape_cast %25 : vector<8xf32> to vector<8x1xf32>
    %27 = vector.broadcast %26 : vector<8x1xf32> to vector<8x8xf32>
    %28 = arith.subf %24, %27 : vector<8x8xf32>
    %29 = math.exp %28 : vector<8x8xf32>
    %cst_23 = arith.constant dense<0.000000e+00> : vector<8xf32>
    %30 = vector.multi_reduction <add>, %29, %cst_23 [1] : vector<8x8xf32> to vector<8xf32>
    %31 = vector.shape_cast %30 : vector<8xf32> to vector<8x1xf32>
    %32 = tpu.reciprocal %31 {approx = true} : vector<8x1xf32> -> vector<8x1xf32>
    %33 = vector.broadcast %32 : vector<8x1xf32> to vector<8x8xf32>
    %34 = arith.mulf %29, %33 : vector<8x8xf32>
    %cst_24 = arith.constant dense<0.000000e+00> : vector<8x8xf32>
    %35 = tpu.matmul %34, %22, %cst_24 {dimension_numbers = #tpu.dot_dimension_numbers<[1], [0], [0], [1], [0, 0, 1, 1], [], []>} : vector<8x8xf32>, vector<8x8xf32>, vector<8x8xf32> -> vector<8x8xf32>
    %c0_25 = arith.constant 0 : index
    %c0_26 = arith.constant 0 : index
    %36 = vector.load %arg13[%c0_25, %c0_26] : memref<8x32xf32, #tpu.memory_space<vmem>>, vector<8x8xf32>
    tpu.vector_store %arg13[%c0_25, %c0_26], %35 {strides = array<i32>} : memref<8x32xf32, #tpu.memory_space<vmem>>, vector<8x8xf32>,
    %37 = vector.extract_strided_slice %20 {offsets = [0, 8], sizes = [8, 8], strides = [1, 1]} : vector<8x32xf32> to vector<8x8xf32>
    %38 = vector.extract_strided_slice %13 {offsets = [0, 8], sizes = [8, 8], strides = [1, 1]} : vector<8x32xf32> to vector<8x8xf32>
    %39 = tpu.transpose %38, [1, 0] : vector<8x8xf32> -> vector<8x8xf32>
    %cst_27 = arith.constant dense<0.000000e+00> : vector<8x8xf32>
    %40 = tpu.matmul %37, %39, %cst_27 {dimension_numbers = #tpu.dot_dimension_numbers<[1], [0], [0], [1], [0, 0, 1, 1], [], []>} : vector<8x8xf32>, vector<8x8xf32>, vector<8x8xf32> -> vector<8x8xf32>
    %cst_28 = arith.constant dense<0xFF800000> : vector<8xf32>
    %41 = vector.multi_reduction <maximumf>, %40, %cst_28 [1] : vector<8x8xf32> to vector<8xf32>
    %42 = vector.shape_cast %41 : vector<8xf32> to vector<8x1xf32>
    %43 = vector.broadcast %42 : vector<8x1xf32> to vector<8x8xf32>
    %44 = arith.subf %40, %43 : vector<8x8xf32>
    %45 = math.exp %44 : vector<8x8xf32>
    %cst_29 = arith.constant dense<0.000000e+00> : vector<8xf32>
    %46 = vector.multi_reduction <add>, %45, %cst_29 [1] : vector<8x8xf32> to vector<8xf32>
    %47 = vector.shape_cast %46 : vector<8xf32> to vector<8x1xf32>
    %48 = tpu.reciprocal %47 {approx = true} : vector<8x1xf32> -> vector<8x1xf32>
    %49 = vector.broadcast %48 : vector<8x1xf32> to vector<8x8xf32>
    %50 = arith.mulf %45, %49 : vector<8x8xf32>
    %cst_30 = arith.constant dense<0.000000e+00> : vector<8x8xf32>
    %51 = tpu.matmul %50, %38, %cst_30 {dimension_numbers = #tpu.dot_dimension_numbers<[1], [0], [0], [1], [0, 0, 1, 1], [], []>} : vector<8x8xf32>, vector<8x8xf32>, vector<8x8xf32> -> vector<8x8xf32>
    %c0_31 = arith.constant 0 : index
    %c8 = arith.constant 8 : index
    %52 = vector.load %arg13[%c0_31, %c8] : memref<8x32xf32, #tpu.memory_space<vmem>>, vector<8x8xf32>
    tpu.vector_store %arg13[%c0_31, %c8], %51 {strides = array<i32>} : memref<8x32xf32, #tpu.memory_space<vmem>>, vector<8x8xf32>,
    %53 = vector.extract_strided_slice %20 {offsets = [0, 16], sizes = [8, 8], strides = [1, 1]} : vector<8x32xf32> to vector<8x8xf32>
    %54 = vector.extract_strided_slice %13 {offsets = [0, 16], sizes = [8, 8], strides = [1, 1]} : vector<8x32xf32> to vector<8x8xf32>
    %55 = tpu.transpose %54, [1, 0] : vector<8x8xf32> -> vector<8x8xf32>
    %cst_32 = arith.constant dense<0.000000e+00> : vector<8x8xf32>
    %56 = tpu.matmul %53, %55, %cst_32 {dimension_numbers = #tpu.dot_dimension_numbers<[1], [0], [0], [1], [0, 0, 1, 1], [], []>} : vector<8x8xf32>, vector<8x8xf32>, vector<8x8xf32> -> vector<8x8xf32>
    %cst_33 = arith.constant dense<0xFF800000> : vector<8xf32>
    %57 = vector.multi_reduction <maximumf>, %56, %cst_33 [1] : vector<8x8xf32> to vector<8xf32>
    %58 = vector.shape_cast %57 : vector<8xf32> to vector<8x1xf32>
    %59 = vector.broadcast %58 : vector<8x1xf32> to vector<8x8xf32>
    %60 = arith.subf %56, %59 : vector<8x8xf32>
    %61 = math.exp %60 : vector<8x8xf32>
    %cst_34 = arith.constant dense<0.000000e+00> : vector<8xf32>
    %62 = vector.multi_reduction <add>, %61, %cst_34 [1] : vector<8x8xf32> to vector<8xf32>
    %63 = vector.shape_cast %62 : vector<8xf32> to vector<8x1xf32>
    %64 = tpu.reciprocal %63 {approx = true} : vector<8x1xf32> -> vector<8x1xf32>
    %65 = vector.broadcast %64 : vector<8x1xf32> to vector<8x8xf32>
    %66 = arith.mulf %61, %65 : vector<8x8xf32>
    %cst_35 = arith.constant dense<0.000000e+00> : vector<8x8xf32>
    %67 = tpu.matmul %66, %54, %cst_35 {dimension_numbers = #tpu.dot_dimension_numbers<[1], [0], [0], [1], [0, 0, 1, 1], [], []>} : vector<8x8xf32>, vector<8x8xf32>, vector<8x8xf32> -> vector<8x8xf32>
    %c0_36 = arith.constant 0 : index
    %c16 = arith.constant 16 : index
    %68 = vector.load %arg13[%c0_36, %c16] : memref<8x32xf32, #tpu.memory_space<vmem>>, vector<8x8xf32>
    tpu.vector_store %arg13[%c0_36, %c16], %67 {strides = array<i32>} : memref<8x32xf32, #tpu.memory_space<vmem>>, vector<8x8xf32>,
    %69 = vector.extract_strided_slice %20 {offsets = [0, 24], sizes = [8, 8], strides = [1, 1]} : vector<8x32xf32> to vector<8x8xf32>
    %70 = vector.extract_strided_slice %13 {offsets = [0, 24], sizes = [8, 8], strides = [1, 1]} : vector<8x32xf32> to vector<8x8xf32>
    %71 = tpu.transpose %70, [1, 0] : vector<8x8xf32> -> vector<8x8xf32>
    %cst_37 = arith.constant dense<0.000000e+00> : vector<8x8xf32>
    %72 = tpu.matmul %69, %71, %cst_37 {dimension_numbers = #tpu.dot_dimension_numbers<[1], [0], [0], [1], [0, 0, 1, 1], [], []>} : vector<8x8xf32>, vector<8x8xf32>, vector<8x8xf32> -> vector<8x8xf32>
    %cst_38 = arith.constant dense<0xFF800000> : vector<8xf32>
    %73 = vector.multi_reduction <maximumf>, %72, %cst_38 [1] : vector<8x8xf32> to vector<8xf32>
    %74 = vector.shape_cast %73 : vector<8xf32> to vector<8x1xf32>
    %75 = vector.broadcast %74 : vector<8x1xf32> to vector<8x8xf32>
    %76 = arith.subf %72, %75 : vector<8x8xf32>
    %77 = math.exp %76 : vector<8x8xf32>
    %cst_39 = arith.constant dense<0.000000e+00> : vector<8xf32>
    %78 = vector.multi_reduction <add>, %77, %cst_39 [1] : vector<8x8xf32> to vector<8xf32>
    %79 = vector.shape_cast %78 : vector<8xf32> to vector<8x1xf32>
    %80 = tpu.reciprocal %79 {approx = true} : vector<8x1xf32> -> vector<8x1xf32>
    %81 = vector.broadcast %80 : vector<8x1xf32> to vector<8x8xf32>
    %82 = arith.mulf %77, %81 : vector<8x8xf32>
    %cst_40 = arith.constant dense<0.000000e+00> : vector<8x8xf32>
    %83 = tpu.matmul %82, %70, %cst_40 {dimension_numbers = #tpu.dot_dimension_numbers<[1], [0], [0], [1], [0, 0, 1, 1], [], []>} : vector<8x8xf32>, vector<8x8xf32>, vector<8x8xf32> -> vector<8x8xf32>
    %c0_41 = arith.constant 0 : index
    %c24 = arith.constant 24 : index
    %84 = vector.load %arg13[%c0_41, %c24] : memref<8x32xf32, #tpu.memory_space<vmem>>, vector<8x8xf32>
    tpu.vector_store %arg13[%c0_41, %c24], %83 {strides = array<i32>} : memref<8x32xf32, #tpu.memory_space<vmem>>, vector<8x8xf32>,
    %c0_42 = arith.constant 0 : index
    %c0_43 = arith.constant 0 : index
    %85 = vector.load %arg13[%c0_42, %c0_43] : memref<8x32xf32, #tpu.memory_space<vmem>>, vector<8x32xf32>
    %c0_44 = arith.constant 0 : index
    %c0_45 = arith.constant 0 : index
    %86 = vector.load %arg10[%c0_44, %c0_45] : memref<32x32xf32, #tpu.memory_space<vmem>>, vector<32x32xf32>
    %cst_46 = arith.constant dense<0.000000e+00> : vector<8x32xf32>
    %87 = tpu.matmul %85, %86, %cst_46 {dimension_numbers = #tpu.dot_dimension_numbers<[1], [0], [0], [1], [0, 0, 1, 1], [], []>} : vector<8x32xf32>, vector<32x32xf32>, vector<8x32xf32> -> vector<8x32xf32>
    %c0_47 = arith.constant 0 : index
    %c0_48 = arith.constant 0 : index
    %88 = vector.load %arg11[%c0_47, %c0_48] : memref<1x32xf32, #tpu.memory_space<vmem>>, vector<1x32xf32>
    %89 = vector.broadcast %88 : vector<1x32xf32> to vector<8x32xf32>
    %90 = arith.addf %87, %89 : vector<8x32xf32>
    %91 = arith.addf %90, %1 : vector<8x32xf32>
    %c0_49 = arith.constant 0 : index
    %c0_50 = arith.constant 0 : index
    %c0_51 = arith.constant 0 : index
    %92 = vector.load %arg12[%c0_49, %c0_50, %c0_51] : memref<1x8x32xf32, #tpu.memory_space<vmem>>, vector<1x8x32xf32>
    %93 = vector.shape_cast %92 : vector<1x8x32xf32> to vector<8x32xf32>
    %94 = vector.shape_cast %91 : vector<8x32xf32> to vector<1x8x32xf32>
    tpu.vector_store %arg12[%c0_49, %c0_50, %c0_51], %94 {strides = array<i32>} : memref<1x8x32xf32, #tpu.memory_space<vmem>>, vector<1x8x32xf32>,
    return
  }
  func.func @transform_0(%arg0: i32) -> (i32, i32, i32) {
    %c0_i32 = arith.constant 0 : i32
    %c0_i32_0 = arith.constant 0 : i32
    %c0_i32_1 = arith.constant 0 : i32
    return %arg0, %c0_i32, %c0_i32_0 : i32, i32, i32
  }
  func.func @transform_1(%arg0: i32) -> (i32, i32, i32) {
    %c0_i32 = arith.constant 0 : i32
    %c0_i32_0 = arith.constant 0 : i32
    %c0_i32_1 = arith.constant 0 : i32
    return %arg0, %c0_i32, %c0_i32_0 : i32, i32, i32
  }
  func.func @transform_2(%arg0: i32) -> (i32, i32) {
    %c0_i32 = arith.constant 0 : i32
    %c0_i32_0 = arith.constant 0 : i32
    %c0_i32_1 = arith.constant 0 : i32
    return %c0_i32, %c0_i32_0 : i32, i32
  }
  func.func @transform_3(%arg0: i32) -> (i32, i32) {
    %c0_i32 = arith.constant 0 : i32
    %c0_i32_0 = arith.constant 0 : i32
    %c0_i32_1 = arith.constant 0 : i32
    return %c0_i32, %c0_i32_0 : i32, i32
  }
  func.func @transform_4(%arg0: i32) -> (i32, i32) {
    %c0_i32 = arith.constant 0 : i32
    %c0_i32_0 = arith.constant 0 : i32
    %c0_i32_1 = arith.constant 0 : i32
    return %c0_i32, %c0_i32_0 : i32, i32
  }
  func.func @transform_5(%arg0: i32) -> (i32, i32) {
    %c0_i32 = arith.constant 0 : i32
    %c0_i32_0 = arith.constant 0 : i32
    %c0_i32_1 = arith.constant 0 : i32
    return %c0_i32, %c0_i32_0 : i32, i32
  }
  func.func @transform_6(%arg0: i32) -> (i32, i32) {
    %c0_i32 = arith.constant 0 : i32
    %c0_i32_0 = arith.constant 0 : i32
    %c0_i32_1 = arith.constant 0 : i32
    return %c0_i32, %c0_i32_0 : i32, i32
  }
  func.func @transform_7(%arg0: i32) -> (i32, i32) {
    %c0_i32 = arith.constant 0 : i32
    %c0_i32_0 = arith.constant 0 : i32
    %c0_i32_1 = arith.constant 0 : i32
    return %c0_i32, %c0_i32_0 : i32, i32
  }
  func.func @transform_8(%arg0: i32) -> (i32, i32) {
    %c0_i32 = arith.constant 0 : i32
    %c0_i32_0 = arith.constant 0 : i32
    %c0_i32_1 = arith.constant 0 : i32
    return %c0_i32, %c0_i32_0 : i32, i32
  }
  func.func @transform_9(%arg0: i32) -> (i32, i32) {
    %c0_i32 = arith.constant 0 : i32
    %c0_i32_0 = arith.constant 0 : i32
    %c0_i32_1 = arith.constant 0 : i32
    return %c0_i32, %c0_i32_0 : i32, i32
  }
  func.func @transform_10(%arg0: i32) -> (i32, i32) {
    %c0_i32 = arith.constant 0 : i32
    %c0_i32_0 = arith.constant 0 : i32
    %c0_i32_1 = arith.constant 0 : i32
    return %c0_i32, %c0_i32_0 : i32, i32
  }
  func.func @transform_11(%arg0: i32) -> (i32, i32, i32) {
    %c0_i32 = arith.constant 0 : i32
    %c0_i32_0 = arith.constant 0 : i32
    %c0_i32_1 = arith.constant 0 : i32
    return %arg0, %c0_i32, %c0_i32_0 : i32, i32, i32
  }
}

</mosaic_0001>

<llo_original>
// kernel: tpu_custom_call.1
$region0: #{tpu_custom_call.1}
  #allocation0 [shape = 'u32[]', space=smem, size = 0x4, offset = 0x4, fixed_abs, tag = 'smem constant byte address 0x4 - core index']
  #allocation1 [shape = 'u32[144,128]{1,0:T(1,128)}', space=vmem, size = 0x12000, scoped, tag = 'internal scratch']
  #allocation2 [shape = 'f32[8,32]{1,0:T(8,128)}', space=vmem, size = 0x1000, scoped, tag = 'scratch operand']
  %s0 = inlined_call_operand.hbm [shape: f32[2,8,32], index: 0, kind: input, shape index: {}]
  %s1 = inlined_call_operand.hbm [shape: f32[2,8,32], index: 1, kind: input, shape index: {}]
  %s2 = inlined_call_operand.hbm [shape: f32[8,32], index: 2, kind: input, shape index: {}]
  %s3 = inlined_call_operand.hbm [shape: f32[8,32], index: 3, kind: input, shape index: {}]
  %s4 = inlined_call_operand.hbm [shape: f32[32,32], index: 4, kind: input, shape index: {}]
  %s5 = inlined_call_operand.hbm [shape: f32[32,32], index: 5, kind: input, shape index: {}]
  %s6 = inlined_call_operand.vmem [shape: f32[1,32], index: 6, kind: input, shape index: {}]
  %s7 = inlined_call_operand.hbm [shape: f32[32,32], index: 7, kind: input, shape index: {}]
  %s8 = inlined_call_operand.vmem [shape: f32[1,32], index: 8, kind: input, shape index: {}]
  %s9 = inlined_call_operand.vmem [shape: f32[32,32], index: 9, kind: input, shape index: {}]
  %s10 = inlined_call_operand.vmem [shape: f32[1,32], index: 10, kind: input, shape index: {}]
  %s11 = inlined_call_operand.hbm [shape: f32[2,8,32], index: 11, kind: output, shape index: {}]
  %s12 = sld [smem:[#allocation0]]
  $region105: #{tpu_custom_call.1} parent=0
    _
  %s14 = ssub.s32 1, %s12
  %s15 = scalar_select 0, %s14, %s12
  $region1: #{tpu_custom_call.1} parent=0
    #allocation3 [shape = 'u8[8192]{0}', space=vmem, size = 0x2000, scoped, tag = 'input window, operand 0']
    #allocation4 [shape = 's32[2]{0}', space=sflag, size = 0x8, scoped, tag = 'scoped memory for tpu_custom_call.1']
    #allocation5 [shape = 's32[2]{0}', space=sflag, size = 0x8, scoped, tag = 'scoped memory for tpu_custom_call.1']
    #allocation6 [shape = 'u8[8192]{0}', space=vmem, size = 0x2000, scoped, tag = 'input window, operand 1']
    #allocation7 [shape = 's32[2]{0}', space=sflag, size = 0x8, scoped, tag = 'scoped memory for tpu_custom_call.1']
    #allocation8 [shape = 'u8[4096]{0}', space=vmem, size = 0x1000, scoped, tag = 'input window, operand 2, single buffered']
    #allocation9 [shape = 'u8[4096]{0}', space=vmem, size = 0x1000, scoped, tag = 'input window, operand 3, single buffered']
    #allocation10 [shape = 's32[1]{0}', space=sflag, size = 0x4, scoped, tag = 'scoped memory for tpu_custom_call.1']
    #allocation11 [shape = 'u8[16384]{0}', space=vmem, size = 0x4000, scoped, tag = 'input window, operand 4, single buffered']
    #allocation12 [shape = 'u8[16384]{0}', space=vmem, size = 0x4000, scoped, tag = 'input window, operand 5, single buffered']
    #allocation13 [shape = 's32[1]{0}', space=sflag, size = 0x4, scoped, tag = 'scoped memory for tpu_custom_call.1']
    #allocation14 [shape = 'u8[16384]{0}', space=vmem, size = 0x4000, scoped, tag = 'input window, operand 7, single buffered']
    #allocation15 [shape = 'u8[8192]{0}', space=vmem, size = 0x2000, scoped, tag = 'output window, operand 0']
    %16 = vsyncpa [#allocation4], 0
    %s17 = scalar_lea.sflag [#allocation4], 1
    %18 = vsyncpa %s17, 0
    %19 = vsyncpa [#allocation7], 0
    %s20 = scalar_lea.sflag [#allocation7], 1
    %21 = vsyncpa %s20, 0
    %22 = vsyncpa [#allocation10], 0
    %23 = vsyncpa [#allocation13], 0
    %24 = vsyncpa [#allocation5], 0
    %s25 = scalar_lea.sflag [#allocation5], 1
    %26 = vsyncpa %s25, 0
    loop: start=0, step=1, limit=4
    $region2: #{tpu_custom_call.1} parent=1 // loop_pre_header
      _
    $region3: #{tpu_custom_call.1} parent=1 // loop_header
      %s28 = sphi 0, %s32
      %p29 = scmp.ge.s32.totalorder %s28, 4
      %s38 = sphi 0, %s40
      %s41 = sphi 0, %s38
      %s42 = sphi 0, %s41
      %s58 = sphi 0, %s42
      %s64 = sphi 0, %s66
      %s67 = sphi 0, %s64
      %s68 = sphi 0, %s67
      %s84 = sphi 0, %s68
      %s88 = sphi 0, %s88
      %s90 = sphi 0, %s88
      %s91 = sphi 0, %s90
      %s105 = sphi 0, %s91
      %s109 = sphi 0, %s109
      %s111 = sphi 0, %s109
      %s112 = sphi 0, %s111
      %s126 = sphi 0, %s112
      %s130 = sphi 0, %s130
      %s132 = sphi 0, %s130
      %s133 = sphi 0, %s132
      %s147 = sphi 0, %s133
      %s151 = sphi 0, %s151
      %s153 = sphi 0, %s151
      %s154 = sphi 0, %s153
      %s168 = sphi 0, %s154
      %s172 = sphi 0, %s172
      %s174 = sphi 0, %s172
      %s175 = sphi 0, %s174
      %s189 = sphi 0, %s175
      %s193 = sphi 0, %s193
      %s195 = sphi 0, %s193
      %s196 = sphi 0, %s195
      %s210 = sphi 0, %s196
      %s214 = sphi 0, %s214
      %s216 = sphi 0, %s214
      %s217 = sphi 0, %s216
      %s231 = sphi 0, %s217
      %s235 = sphi 0, %s235
      %s237 = sphi 0, %s235
      %s238 = sphi 0, %s237
      %s252 = sphi 0, %s238
      %s256 = sphi 0, %s256
      %s258 = sphi 0, %s256
      %s259 = sphi 0, %s258
      %s273 = sphi 0, %s259
      %s279 = sphi 0, %s281
      %s282 = sphi 0, %s279
      %s283 = sphi 0, %s282
      %s299 = sphi 0, %s283
    $region4: #{tpu_custom_call.1} parent=1 // loop_header_branch
      %31 = sbr.rel (%p29) target = $region8
    $region5: #{tpu_custom_call.1} parent=1 // loop_body
      %s33 = ssub.s32 %s28, 1
      %s34 = ssub.s32 %s28, 2
      %s35 = sadd.s32 %s28, 1
      %s36 = ssub.s32 %s28, %s35
      %p37 = scmp.eq.s32.totalorder %s36, 0
      %s39 = sadd.s32 %s38, 1
      %s40 = scalar_select %p37, %s38, %s39
      %p43 = pneg %p37
      %p44 = scmp.eq.s32.totalorder %s28, 1
      %p45 = por %p43, %p44
      %p46 = scmp.ne.s32.totalorder %s38, %s41
      %p47 = scmp.eq.s32.totalorder %s28, 0
      %p48 = por %p46, %p47
      %p49 = scmp.ne.s32.totalorder %s38, %s41
      %p50 = scmp.eq.s32.totalorder %s33, 1
      %p51 = por %p49, %p50
      %p52 = scmp.ne.s32.totalorder %s41, %s42
      %p53 = scmp.eq.s32.totalorder %s33, 0
      %p54 = por %p52, %p53
      %p55 = scmp.ne.s32.totalorder %s41, %s42
      %p56 = scmp.eq.s32.totalorder %s34, 1
      %p57 = por %p55, %p56
      %p59 = scmp.ne.s32.totalorder %s42, %s58
      %p60 = scmp.eq.s32.totalorder %s34, 0
      %p61 = por %p59, %p60
      %s62 = ssub.s32 %s28, %s35
      %p63 = scmp.eq.s32.totalorder %s62, 0
      %s65 = sadd.s32 %s64, 1
      %s66 = scalar_select %p63, %s64, %s65
      %p69 = pneg %p63
      %p70 = scmp.eq.s32.totalorder %s28, 1
      %p71 = por %p69, %p70
      %p72 = scmp.ne.s32.totalorder %s64, %s67
      %p73 = scmp.eq.s32.totalorder %s28, 0
      %p74 = por %p72, %p73
      %p75 = scmp.ne.s32.totalorder %s64, %s67
      %p76 = scmp.eq.s32.totalorder %s33, 1
      %p77 = por %p75, %p76
      %p78 = scmp.ne.s32.totalorder %s67, %s68
      %p79 = scmp.eq.s32.totalorder %s33, 0
      %p80 = por %p78, %p79
      %p81 = scmp.ne.s32.totalorder %s67, %s68
      %p82 = scmp.eq.s32.totalorder %s34, 1
      %p83 = por %p81, %p82
      %p85 = scmp.ne.s32.totalorder %s68, %s84
      %p86 = scmp.eq.s32.totalorder %s34, 0
      %p87 = por %p85, %p86
      %s89 = sadd.s32 %s88, 1
      %p92 = scmp.eq.s32.totalorder %s28, 1
      %p93 = scmp.ne.s32.totalorder %s88, %s90
      %p94 = scmp.eq.s32.totalorder %s28, 0
      %p95 = por %p93, %p94
      %p96 = scmp.ne.s32.totalorder %s88, %s90
      %p97 = scmp.eq.s32.totalorder %s33, 1
      %p98 = por %p96, %p97
      %p99 = scmp.ne.s32.totalorder %s90, %s91
      %p100 = scmp.eq.s32.totalorder %s33, 0
      %p101 = por %p99, %p100
      %p102 = scmp.ne.s32.totalorder %s90, %s91
      %p103 = scmp.eq.s32.totalorder %s34, 1
      %p104 = por %p102, %p103
      %p106 = scmp.ne.s32.totalorder %s91, %s105
      %p107 = scmp.eq.s32.totalorder %s34, 0
      %p108 = por %p106, %p107
      %s110 = sadd.s32 %s109, 1
      %p113 = scmp.eq.s32.totalorder %s28, 1
      %p114 = scmp.ne.s32.totalorder %s109, %s111
      %p115 = scmp.eq.s32.totalorder %s28, 0
      %p116 = por %p114, %p115
      %p117 = scmp.ne.s32.totalorder %s109, %s111
      %p118 = scmp.eq.s32.totalorder %s33, 1
      %p119 = por %p117, %p118
      %p120 = scmp.ne.s32.totalorder %s111, %s112
      %p121 = scmp.eq.s32.totalorder %s33, 0
      %p122 = por %p120, %p121
      %p123 = scmp.ne.s32.totalorder %s111, %s112
      %p124 = scmp.eq.s32.totalorder %s34, 1
      %p125 = por %p123, %p124
      %p127 = scmp.ne.s32.totalorder %s112, %s126
      %p128 = scmp.eq.s32.totalorder %s34, 0
      %p129 = por %p127, %p128
      %s131 = sadd.s32 %s130, 1
      %p134 = scmp.eq.s32.totalorder %s28, 1
      %p135 = scmp.ne.s32.totalorder %s130, %s132
      %p136 = scmp.eq.s32.totalorder %s28, 0
      %p137 = por %p135, %p136
      %p138 = scmp.ne.s32.totalorder %s130, %s132
      %p139 = scmp.eq.s32.totalorder %s33, 1
      %p140 = por %p138, %p139
      %p141 = scmp.ne.s32.totalorder %s132, %s133
      %p142 = scmp.eq.s32.totalorder %s33, 0
      %p143 = por %p141, %p142
      %p144 = scmp.ne.s32.totalorder %s132, %s133
      %p145 = scmp.eq.s32.totalorder %s34, 1
      %p146 = por %p144, %p145
      %p148 = scmp.ne.s32.totalorder %s133, %s147
      %p149 = scmp.eq.s32.totalorder %s34, 0
      %p150 = por %p148, %p149
      %s152 = sadd.s32 %s151, 1
      %p155 = scmp.eq.s32.totalorder %s28, 1
      %p156 = scmp.ne.s32.totalorder %s151, %s153
      %p157 = scmp.eq.s32.totalorder %s28, 0
      %p158 = por %p156, %p157
      %p159 = scmp.ne.s32.totalorder %s151, %s153
      %p160 = scmp.eq.s32.totalorder %s33, 1
      %p161 = por %p159, %p160
      %p162 = scmp.ne.s32.totalorder %s153, %s154
      %p163 = scmp.eq.s32.totalorder %s33, 0
      %p164 = por %p162, %p163
      %p165 = scmp.ne.s32.totalorder %s153, %s154
      %p166 = scmp.eq.s32.totalorder %s34, 1
      %p167 = por %p165, %p166
      %p169 = scmp.ne.s32.totalorder %s154, %s168
      %p170 = scmp.eq.s32.totalorder %s34, 0
      %p171 = por %p169, %p170
      %s173 = sadd.s32 %s172, 1
      %p176 = scmp.eq.s32.totalorder %s28, 1
      %p177 = scmp.ne.s32.totalorder %s172, %s174
      %p178 = scmp.eq.s32.totalorder %s28, 0
      %p179 = por %p177, %p178
      %p180 = scmp.ne.s32.totalorder %s172, %s174
      %p181 = scmp.eq.s32.totalorder %s33, 1
      %p182 = por %p180, %p181
      %p183 = scmp.ne.s32.totalorder %s174, %s175
      %p184 = scmp.eq.s32.totalorder %s33, 0
      %p185 = por %p183, %p184
      %p186 = scmp.ne.s32.totalorder %s174, %s175
      %p187 = scmp.eq.s32.totalorder %s34, 1
      %p188 = por %p186, %p187
      %p190 = scmp.ne.s32.totalorder %s175, %s189
      %p191 = scmp.eq.s32.totalorder %s34, 0
      %p192 = por %p190, %p191
      %s194 = sadd.s32 %s193, 1
      %p197 = scmp.eq.s32.totalorder %s28, 1
      %p198 = scmp.ne.s32.totalorder %s193, %s195
      %p199 = scmp.eq.s32.totalorder %s28, 0
      %p200 = por %p198, %p199
      %p201 = scmp.ne.s32.totalorder %s193, %s195
      %p202 = scmp.eq.s32.totalorder %s33, 1
      %p203 = por %p201, %p202
      %p204 = scmp.ne.s32.totalorder %s195, %s196
      %p205 = scmp.eq.s32.totalorder %s33, 0
      %p206 = por %p204, %p205
      %p207 = scmp.ne.s32.totalorder %s195, %s196
      %p208 = scmp.eq.s32.totalorder %s34, 1
      %p209 = por %p207, %p208
      %p211 = scmp.ne.s32.totalorder %s196, %s210
      %p212 = scmp.eq.s32.totalorder %s34, 0
      %p213 = por %p211, %p212
      %s215 = sadd.s32 %s214, 1
      %p218 = scmp.eq.s32.totalorder %s28, 1
      %p219 = scmp.ne.s32.totalorder %s214, %s216
      %p220 = scmp.eq.s32.totalorder %s28, 0
      %p221 = por %p219, %p220
      %p222 = scmp.ne.s32.totalorder %s214, %s216
      %p223 = scmp.eq.s32.totalorder %s33, 1
      %p224 = por %p222, %p223
      %p225 = scmp.ne.s32.totalorder %s216, %s217
      %p226 = scmp.eq.s32.totalorder %s33, 0
      %p227 = por %p225, %p226
      %p228 = scmp.ne.s32.totalorder %s216, %s217
      %p229 = scmp.eq.s32.totalorder %s34, 1
      %p230 = por %p228, %p229
      %p232 = scmp.ne.s32.totalorder %s217, %s231
      %p233 = scmp.eq.s32.totalorder %s34, 0
      %p234 = por %p232, %p233
      %s236 = sadd.s32 %s235, 1
      %p239 = scmp.eq.s32.totalorder %s28, 1
      %p240 = scmp.ne.s32.totalorder %s235, %s237
      %p241 = scmp.eq.s32.totalorder %s28, 0
      %p242 = por %p240, %p241
      %p243 = scmp.ne.s32.totalorder %s235, %s237
      %p244 = scmp.eq.s32.totalorder %s33, 1
      %p245 = por %p243, %p244
      %p246 = scmp.ne.s32.totalorder %s237, %s238
      %p247 = scmp.eq.s32.totalorder %s33, 0
      %p248 = por %p246, %p247
      %p249 = scmp.ne.s32.totalorder %s237, %s238
      %p250 = scmp.eq.s32.totalorder %s34, 1
      %p251 = por %p249, %p250
      %p253 = scmp.ne.s32.totalorder %s238, %s252
      %p254 = scmp.eq.s32.totalorder %s34, 0
      %p255 = por %p253, %p254
      %s257 = sadd.s32 %s256, 1
      %p260 = scmp.eq.s32.totalorder %s28, 1
      %p261 = scmp.ne.s32.totalorder %s256, %s258
      %p262 = scmp.eq.s32.totalorder %s28, 0
      %p263 = por %p261, %p262
      %p264 = scmp.ne.s32.totalorder %s256, %s258
      %p265 = scmp.eq.s32.totalorder %s33, 1
      %p266 = por %p264, %p265
      %p267 = scmp.ne.s32.totalorder %s258, %s259
      %p268 = scmp.eq.s32.totalorder %s33, 0
      %p269 = por %p267, %p268
      %p270 = scmp.ne.s32.totalorder %s258, %s259
      %p271 = scmp.eq.s32.totalorder %s34, 1
      %p272 = por %p270, %p271
      %p274 = scmp.ne.s32.totalorder %s259, %s273
      %p275 = scmp.eq.s32.totalorder %s34, 0
      %p276 = por %p274, %p275
      %s277 = ssub.s32 %s28, %s35
      %p278 = scmp.eq.s32.totalorder %s277, 0
      %s280 = sadd.s32 %s279, 1
      %s281 = scalar_select %p278, %s279, %s280
      %p284 = pneg %p278
      %p285 = scmp.eq.s32.totalorder %s28, 1
      %p286 = por %p284, %p285
      %p287 = scmp.ne.s32.totalorder %s279, %s282
      %p288 = scmp.eq.s32.totalorder %s28, 0
      %p289 = por %p287, %p288
      %p290 = scmp.ne.s32.totalorder %s279, %s282
      %p291 = scmp.eq.s32.totalorder %s33, 1
      %p292 = por %p290, %p291
      %p293 = scmp.ne.s32.totalorder %s282, %s283
      %p294 = scmp.eq.s32.totalorder %s33, 0
      %p295 = por %p293, %p294
      %p296 = scmp.ne.s32.totalorder %s282, %s283
      %p297 = scmp.eq.s32.totalorder %s34, 1
      %p298 = por %p296, %p297
      %p300 = scmp.ne.s32.totalorder %s283, %s299
      %p301 = scmp.eq.s32.totalorder %s34, 0
      %p302 = por %p300, %p301
      %p303 = scmp.le.s32.totalorder 1, %s28
      %p304 = scmp.lt.s32.totalorder %s28, 3
      %p305 = pnand %p303, %p304
      %p306 = pneg %p305
      // Predicated region
      $region9: #{tpu_custom_call.1} parent=5 // pred_check
        _
      $region10: #{tpu_custom_call.1} parent=5 // pred_check_branch
        %308 = sbr.rel (%p305) target = $region12
      $region11: #{tpu_custom_call.1} parent=5 // pred_region
        %s309 = ssub.s32 %s28, 1
        // Predicated region
        $region13: #{tpu_custom_call.1} parent=11 // pred_check
          %p310 = pneg %p101
        $region14: #{tpu_custom_call.1} parent=11 // pred_check_branch
          %312 = sbr.rel (%p310) target = $region16
        $region15: #{tpu_custom_call.1} parent=11 // pred_region
          %s314 = ssub.s32 128, 128
          %315 = vsyncadd [#allocation7], %s314
          %s317 = sshll.u32 [#allocation8], 4
          %s318 = int_to_ptr.vmem [resolvable:$true] %s317
          %320 = dma.hbm_to_vmem [thread:$0]  %s2, 128, %s318, [#allocation7]
        $region16: #{tpu_custom_call.1} parent=11 // pred_fallthru
          _
        // Predicated region
        $region17: #{tpu_custom_call.1} parent=11 // pred_check
          %p321 = pneg %p122
        $region18: #{tpu_custom_call.1} parent=11 // pred_check_branch
          %323 = sbr.rel (%p321) target = $region20
        $region19: #{tpu_custom_call.1} parent=11 // pred_region
          %s325 = ssub.s32 128, 128
          %326 = vsyncadd [#allocation10], %s325
          %s328 = sshll.u32 [#allocation9], 4
          %s329 = int_to_ptr.vmem [resolvable:$true] %s328
          %331 = dma.hbm_to_vmem [thread:$0]  %s3, 128, %s329, [#allocation10]
        $region20: #{tpu_custom_call.1} parent=11 // pred_fallthru
          _
        // Predicated region
        $region21: #{tpu_custom_call.1} parent=11 // pred_check
          %p332 = pneg %p143
        $region22: #{tpu_custom_call.1} parent=11 // pred_check_branch
          %334 = sbr.rel (%p332) target = $region24
        $region23: #{tpu_custom_call.1} parent=11 // pred_region
          %s336 = ssub.s32 512, 512
          %337 = vsyncadd [#allocation10], %s336
          %s338 = sshll.u32 [#allocation11], 4
          %s339 = int_to_ptr.vmem [resolvable:$true] %s338
          %344 = dma.hbm_to_vmem [thread:$0]  %s4, 512, %s339, [#allocation10], 128, 128, 8
        $region24: #{tpu_custom_call.1} parent=11 // pred_fallthru
          _
        // Predicated region
        $region25: #{tpu_custom_call.1} parent=11 // pred_check
          %p345 = pneg %p164
        $region26: #{tpu_custom_call.1} parent=11 // pred_check_branch
          %347 = sbr.rel (%p345) target = $region28
        $region27: #{tpu_custom_call.1} parent=11 // pred_region
          %s349 = ssub.s32 512, 512
          %350 = vsyncadd [#allocation13], %s349
          %s351 = sshll.u32 [#allocation12], 4
          %s352 = int_to_ptr.vmem [resolvable:$true] %s351
          %357 = dma.hbm_to_vmem [thread:$0]  %s5, 512, %s352, [#allocation13], 128, 128, 8
        $region28: #{tpu_custom_call.1} parent=11 // pred_fallthru
          _
        // Predicated region
        $region29: #{tpu_custom_call.1} parent=11 // pred_check
          %p358 = pneg %p185
        $region30: #{tpu_custom_call.1} parent=11 // pred_check_branch
          %360 = sbr.rel (%p358) target = $region32
        $region31: #{tpu_custom_call.1} parent=11 // pred_region
          _
        $region32: #{tpu_custom_call.1} parent=11 // pred_fallthru
          _
        // Predicated region
        $region33: #{tpu_custom_call.1} parent=11 // pred_check
          %p361 = pneg %p206
        $region34: #{tpu_custom_call.1} parent=11 // pred_check_branch
          %363 = sbr.rel (%p361) target = $region36
        $region35: #{tpu_custom_call.1} parent=11 // pred_region
          %s365 = ssub.s32 512, 512
          %366 = vsyncadd [#allocation13], %s365
          %s367 = sshll.u32 [#allocation14], 4
          %s368 = int_to_ptr.vmem [resolvable:$true] %s367
          %373 = dma.hbm_to_vmem [thread:$0]  %s7, 512, %s368, [#allocation13], 128, 128, 8
        $region36: #{tpu_custom_call.1} parent=11 // pred_fallthru
          _
        // Predicated region
        $region37: #{tpu_custom_call.1} parent=11 // pred_check
          %p374 = pneg %p227
        $region38: #{tpu_custom_call.1} parent=11 // pred_check_branch
          %376 = sbr.rel (%p374) target = $region40
        $region39: #{tpu_custom_call.1} parent=11 // pred_region
          _
        $region40: #{tpu_custom_call.1} parent=11 // pred_fallthru
          _
        // Predicated region
        $region41: #{tpu_custom_call.1} parent=11 // pred_check
          %p377 = pneg %p248
        $region42: #{tpu_custom_call.1} parent=11 // pred_check_branch
          %379 = sbr.rel (%p377) target = $region44
        $region43: #{tpu_custom_call.1} parent=11 // pred_region
          _
        $region44: #{tpu_custom_call.1} parent=11 // pred_fallthru
          _
        // Predicated region
        $region45: #{tpu_custom_call.1} parent=11 // pred_check
          %p380 = pneg %p269
        $region46: #{tpu_custom_call.1} parent=11 // pred_check_branch
          %382 = sbr.rel (%p380) target = $region48
        $region47: #{tpu_custom_call.1} parent=11 // pred_region
          _
        $region48: #{tpu_custom_call.1} parent=11 // pred_fallthru
          _
      $region12: #{tpu_custom_call.1} parent=5 // pred_fallthru
        _
      %p383 = scmp.lt.s32.totalorder %s28, 2
      // Predicated region
      $region49: #{tpu_custom_call.1} parent=5 // pred_check
        %p384 = pneg %p383
      $region50: #{tpu_custom_call.1} parent=5 // pred_check_branch
        %386 = sbr.rel (%p384) target = $region52
      $region51: #{tpu_custom_call.1} parent=5 // pred_region
        // Predicated region
        $region53: #{tpu_custom_call.1} parent=51 // pred_check
          %p387 = pneg %p48
        $region54: #{tpu_custom_call.1} parent=51 // pred_check_branch
          %389 = sbr.rel (%p387) target = $region56
        $region55: #{tpu_custom_call.1} parent=51 // pred_region
          %s390 = sand.u32 %s38, 1
          %s391 = scalar_lea.sflag [#allocation4], %s390
          %s392 = sand.u32 %s38, 1
          %s393 = smul.addr %s392, 8
          %s394 = scalar_lea.vmem [#allocation3], %s393
          %s396 = ssub.s32 128, 128
          %397 = vsyncadd %s391, %s396
          %s398 = smul.addr %s28, 128
          %s399 = scalar_lea.hbm %s0, %s398
          %s401 = sshll.u32 %s394, 4
          %s402 = int_to_ptr.vmem [resolvable:$true] %s401
          %404 = dma.hbm_to_vmem [thread:$0]  %s399, 128, %s402, %s391
        $region56: #{tpu_custom_call.1} parent=51 // pred_fallthru
          _
        // Predicated region
        $region57: #{tpu_custom_call.1} parent=51 // pred_check
          %p405 = pneg %p74
        $region58: #{tpu_custom_call.1} parent=51 // pred_check_branch
          %407 = sbr.rel (%p405) target = $region60
        $region59: #{tpu_custom_call.1} parent=51 // pred_region
          %s408 = sand.u32 %s28, 1
          %s409 = scalar_lea.sflag [#allocation7], %s408
          %s410 = sand.u32 %s64, 1
          %s411 = smul.addr %s410, 8
          %s412 = scalar_lea.vmem [#allocation6], %s411
          %s414 = ssub.s32 128, 128
          %415 = vsyncadd %s409, %s414
          %s416 = smul.addr %s28, 128
          %s417 = scalar_lea.hbm %s1, %s416
          %s419 = sshll.u32 %s412, 4
          %s420 = int_to_ptr.vmem [resolvable:$true] %s419
          %422 = dma.hbm_to_vmem [thread:$0]  %s417, 128, %s420, %s409
        $region60: #{tpu_custom_call.1} parent=51 // pred_fallthru
          _
      $region52: #{tpu_custom_call.1} parent=5 // pred_fallthru
        _
      %p423 = scmp.le.s32.totalorder 1, %s28
      %p424 = scmp.lt.s32.totalorder %s28, 3
      %p425 = pnand %p423, %p424
      %p426 = pneg %p425
      // Predicated region
      $region61: #{tpu_custom_call.1} parent=5 // pred_check
        _
      $region62: #{tpu_custom_call.1} parent=5 // pred_check_branch
        %428 = sbr.rel (%p425) target = $region64
      $region63: #{tpu_custom_call.1} parent=5 // pred_region
        %s429 = ssub.s32 %s28, 1
        %s430 = sand.u32 %s41, 1
        %s431 = scalar_lea.sflag [#allocation4], %s430
        %s432 = sand.u32 %s41, 1
        %s433 = smul.addr %s432, 8
        %s434 = scalar_lea.vmem [#allocation3], %s433
        // Predicated region
        $region65: #{tpu_custom_call.1} parent=63 // pred_check
          %p435 = pneg %p54
        $region66: #{tpu_custom_call.1} parent=63 // pred_check_branch
          %437 = sbr.rel (%p435) target = $region68
        $region67: #{tpu_custom_call.1} parent=63 // pred_region
          %438 = dma.done %s431, 128
        $region68: #{tpu_custom_call.1} parent=63 // pred_fallthru
          _
        %s439 = sand.u32 %s33, 1
        %s440 = scalar_lea.sflag [#allocation7], %s439
        %s441 = sand.u32 %s67, 1
        %s442 = smul.addr %s441, 8
        %s443 = scalar_lea.vmem [#allocation6], %s442
        // Predicated region
        $region69: #{tpu_custom_call.1} parent=63 // pred_check
          %p444 = pneg %p80
        $region70: #{tpu_custom_call.1} parent=63 // pred_check_branch
          %446 = sbr.rel (%p444) target = $region72
        $region71: #{tpu_custom_call.1} parent=63 // pred_region
          %447 = dma.done %s440, 128
        $region72: #{tpu_custom_call.1} parent=63 // pred_fallthru
          _
        // Predicated region
        $region73: #{tpu_custom_call.1} parent=63 // pred_check
          %p448 = pneg %p101
        $region74: #{tpu_custom_call.1} parent=63 // pred_check_branch
          %450 = sbr.rel (%p448) target = $region76
        $region75: #{tpu_custom_call.1} parent=63 // pred_region
          %451 = dma.done [#allocation7], 128
        $region76: #{tpu_custom_call.1} parent=63 // pred_fallthru
          _
        // Predicated region
        $region77: #{tpu_custom_call.1} parent=63 // pred_check
          %p452 = pneg %p122
        $region78: #{tpu_custom_call.1} parent=63 // pred_check_branch
          %454 = sbr.rel (%p452) target = $region80
        $region79: #{tpu_custom_call.1} parent=63 // pred_region
          %455 = dma.done [#allocation10], 128
        $region80: #{tpu_custom_call.1} parent=63 // pred_fallthru
          _
        // Predicated region
        $region81: #{tpu_custom_call.1} parent=63 // pred_check
          %p456 = pneg %p143
        $region82: #{tpu_custom_call.1} parent=63 // pred_check_branch
          %458 = sbr.rel (%p456) target = $region84
        $region83: #{tpu_custom_call.1} parent=63 // pred_region
          %459 = dma.done [#allocation10], 512
        $region84: #{tpu_custom_call.1} parent=63 // pred_fallthru
          _
        // Predicated region
        $region85: #{tpu_custom_call.1} parent=63 // pred_check
          %p460 = pneg %p164
        $region86: #{tpu_custom_call.1} parent=63 // pred_check_branch
          %462 = sbr.rel (%p460) target = $region88
        $region87: #{tpu_custom_call.1} parent=63 // pred_region
          %463 = dma.done [#allocation13], 512
        $region88: #{tpu_custom_call.1} parent=63 // pred_fallthru
          _
        // Predicated region
        $region89: #{tpu_custom_call.1} parent=63 // pred_check
          %p464 = pneg %p206
        $region90: #{tpu_custom_call.1} parent=63 // pred_check_branch
          %466 = sbr.rel (%p464) target = $region92
        $region91: #{tpu_custom_call.1} parent=63 // pred_region
          %467 = dma.done [#allocation13], 512
        $region92: #{tpu_custom_call.1} parent=63 // pred_fallthru
          _
        %s468 = sand.u32 %s41, 1
        %s469 = scalar_lea.sflag [#allocation4], %s468
        %s470 = sand.u32 %s41, 1
        %s471 = smul.addr %s470, 8
        %s472 = scalar_lea.vmem [#allocation3], %s471
        %p473 = pneg %p54
        %p474 = pneg %p51
        %s475 = sand.u32 %s33, 1
        %s476 = scalar_lea.sflag [#allocation7], %s475
        %s477 = sand.u32 %s67, 1
        %s478 = smul.addr %s477, 8
        %s479 = scalar_lea.vmem [#allocation6], %s478
        %p480 = pneg %p80
        %p481 = pneg %p77
        %p482 = pneg %p101
        %p483 = pneg %p98
        %p484 = pneg %p122
        %p485 = pneg %p119
        %p486 = pneg %p143
        %p487 = pneg %p140
        %p488 = pneg %p164
        %p489 = pneg %p161
        %p490 = pneg %p185
        %p491 = pneg %p182
        %p492 = pneg %p206
        %p493 = pneg %p203
        %p494 = pneg %p227
        %p495 = pneg %p224
        %p496 = pneg %p248
        %p497 = pneg %p245
        %p498 = pneg %p269
        %p499 = pneg %p266
        %p500 = pneg %p295
        %p501 = pneg %p292
        %s502 = sand.u32 %s282, 1
        %s503 = scalar_lea.sflag [#allocation5], %s502
        %s504 = sand.u32 %s282, 1
        %s505 = smul.addr %s504, 8
        %s506 = scalar_lea.vmem [#allocation15], %s505
        %v507 = vld [vmem:[%s434] sm:$0xff]
        %v508 = vld [vmem:[%s443] sm:$0xff]
        %v509 = vld [vmem:[#allocation12] sm:$0xff]
        %v510 = vld [vmem:[#allocation12 + $0x8] sm:$0xff]
        %v511 = vld [vmem:[#allocation12 + $0x10] sm:$0xff]
        %v512 = vld [vmem:[#allocation12 + $0x18] sm:$0xff]
        %v513 = vld [vmem:[%s6] sm:$0x1]
        %v515 = vlaneseq
        %v516 = vshrl.u32 %v515, 7
        %v517 = vsub.s32 0, %v516
        %v518 = vrot.slane %v513, %v517
        %vm520 = vcmask 261120
        %v522 = vsel %vm520, %v508, 0
        %524 = vmatprep.subr.mxu0 0.0
        %525 = vmatpush1.msra.mxu0 %v509
        %526 = vmatprep.subr.mxu0 0.0
        %527 = vmatpush1.msra.mxu0 %v510
        %528 = vmatprep.subr.mxu0 0.0
        %529 = vmatpush1.msra.mxu0 %v511
        %530 = vmatprep.subr.mxu0 0.0
        %531 = vmatpush1.msra.mxu0 %v512
        %532 = vmatprep.subr.mxu0 0.0
        %533 = vmatpush1.msra.mxu0 0.0
        %534 = vmatprep.subr.mxu0 0.0
        %535 = vmatpush1.msra.mxu0 0.0
        %536 = vmatprep.subr.mxu0 0.0
        %537 = vmatpush1.msra.mxu0 0.0
        %538 = vmatprep.subr.mxu0 0.0
        %539 = vmatpush1.msra.mxu0 0.0
        %540 = vmatprep.subr.mxu0 0.0
        %541 = vmatpush1.msra.mxu0 0.0
        %542 = vmatprep.subr.mxu0 0.0
        %543 = vmatpush1.msra.mxu0 0.0
        %544 = vmatprep.subr.mxu0 0.0
        %545 = vmatpush1.msra.mxu0 0.0
        %546 = vmatprep.subr.mxu0 0.0
        %547 = vmatpush1.msra.mxu0 0.0
        %548 = vmatprep.subr.mxu0 0.0
        %549 = vmatpush1.msra.mxu0 0.0
        %550 = vmatprep.subr.mxu0 0.0
        %551 = vmatpush1.msra.mxu0 0.0
        %552 = vmatprep.subr.mxu0 0.0
        %553 = vmatpush1.msra.mxu0 0.0
        %554 = vmatprep.subr.mxu0 0.0
        %555 = vmatpush1.msra.mxu0 0.0
        %556 = vmatprep.subr.mxu0 0.0
        %557 = vmatpush1.msra.mxu0 0.0
        %558 = vmatprep.subr.mxu0 0.0
        %559 = vmatpush1.msra.mxu0 0.0
        %560 = vmatprep.subr.mxu0 0.0
        %561 = vmatpush1.msra.mxu0 0.0
        %562 = vmatprep.subr.mxu0 0.0
        %563 = vmatpush1.msra.mxu0 0.0
        %564 = vmatprep.subr.mxu0 0.0
        %565 = vmatpush1.msra.mxu0 0.0
        %566 = vmatprep.subr.mxu0 0.0
        %567 = vmatpush1.msra.mxu0 0.0
        %568 = vmatprep.subr.mxu0 0.0
        %569 = vmatpush1.msra.mxu0 0.0
        %570 = vmatprep.subr.mxu0 0.0
        %571 = vmatpush1.msra.mxu0 0.0
        %572 = vmatprep.subr.mxu0 0.0
        %573 = vmatpush1.msra.mxu0 0.0
        %574 = vmatprep.subr.mxu0 0.0
        %575 = vmatpush1.msra.mxu0 0.0
        %576 = vmatprep.subr.mxu0 0.0
        %577 = vmatpush1.msra.mxu0 0.0
        %578 = vmatprep.subr.mxu0 0.0
        %579 = vmatpush1.msra.mxu0 0.0
        %580 = vmatprep.subr.mxu0 0.0
        %581 = vmatpush1.msra.mxu0 0.0
        %582 = vmatprep.subr.mxu0 0.0
        %583 = vmatpush1.msra.mxu0 0.0
        %584 = vmatprep.subr.mxu0 0.0
        %585 = vmatpush1.msra.mxu0 0.0
        %586 = vmatprep.subr.mxu0 0.0
        %587 = vmatpush1.msra.mxu0 0.0
        %588 = vmatprep.mubr.f32.mxu0 0.0
        %589 = vmatmul.mubr.f32.gmra.mrb[0].mxu0 %v522
        %v590 = vpop.f32.mrb[0].mxu0
        %v591 = vadd.f32 %v518, %v590
        %v592 = vpop.f32.mrb[0].mxu0
        %593 = vdwg.mxu0
        %v594 = vld [vmem:[#allocation14] sm:$0xff]
        %v595 = vld [vmem:[#allocation14 + $0x8] sm:$0xff]
        %v596 = vld [vmem:[#allocation14 + $0x10] sm:$0xff]
        %v597 = vld [vmem:[#allocation14 + $0x18] sm:$0xff]
        %v598 = vld [vmem:[%s8] sm:$0x1]
        %v600 = vlaneseq
        %v601 = vshrl.u32 %v600, 7
        %v602 = vsub.s32 0, %v601
        %v603 = vrot.slane %v598, %v602
        %v606 = vsel %vm520, %v507, 0
        %608 = vmatprep.subr.mxu0 0.0
        %609 = vmatpush1.msra.mxu0 %v594
        %610 = vmatprep.subr.mxu0 0.0
        %611 = vmatpush1.msra.mxu0 %v595
        %612 = vmatprep.subr.mxu0 0.0
        %613 = vmatpush1.msra.mxu0 %v596
        %614 = vmatprep.subr.mxu0 0.0
        %615 = vmatpush1.msra.mxu0 %v597
        %616 = vmatprep.subr.mxu0 0.0
        %617 = vmatpush1.msra.mxu0 0.0
        %618 = vmatprep.subr.mxu0 0.0
        %619 = vmatpush1.msra.mxu0 0.0
        %620 = vmatprep.subr.mxu0 0.0
        %621 = vmatpush1.msra.mxu0 0.0
        %622 = vmatprep.subr.mxu0 0.0
        %623 = vmatpush1.msra.mxu0 0.0
        %624 = vmatprep.subr.mxu0 0.0
        %625 = vmatpush1.msra.mxu0 0.0
        %626 = vmatprep.subr.mxu0 0.0
        %627 = vmatpush1.msra.mxu0 0.0
        %628 = vmatprep.subr.mxu0 0.0
        %629 = vmatpush1.msra.mxu0 0.0
        %630 = vmatprep.subr.mxu0 0.0
        %631 = vmatpush1.msra.mxu0 0.0
        %632 = vmatprep.subr.mxu0 0.0
        %633 = vmatpush1.msra.mxu0 0.0
        %634 = vmatprep.subr.mxu0 0.0
        %635 = vmatpush1.msra.mxu0 0.0
        %636 = vmatprep.subr.mxu0 0.0
        %637 = vmatpush1.msra.mxu0 0.0
        %638 = vmatprep.subr.mxu0 0.0
        %639 = vmatpush1.msra.mxu0 0.0
        %640 = vmatprep.subr.mxu0 0.0
        %641 = vmatpush1.msra.mxu0 0.0
        %642 = vmatprep.subr.mxu0 0.0
        %643 = vmatpush1.msra.mxu0 0.0
        %644 = vmatprep.subr.mxu0 0.0
        %645 = vmatpush1.msra.mxu0 0.0
        %646 = vmatprep.subr.mxu0 0.0
        %647 = vmatpush1.msra.mxu0 0.0
        %648 = vmatprep.subr.mxu0 0.0
        %649 = vmatpush1.msra.mxu0 0.0
        %650 = vmatprep.subr.mxu0 0.0
        %651 = vmatpush1.msra.mxu0 0.0
        %652 = vmatprep.subr.mxu0 0.0
        %653 = vmatpush1.msra.mxu0 0.0
        %654 = vmatprep.subr.mxu0 0.0
        %655 = vmatpush1.msra.mxu0 0.0
        %656 = vmatprep.subr.mxu0 0.0
        %657 = vmatpush1.msra.mxu0 0.0
        %658 = vmatprep.subr.mxu0 0.0
        %659 = vmatpush1.msra.mxu0 0.0
        %660 = vmatprep.subr.mxu0 0.0
        %661 = vmatpush1.msra.mxu0 0.0
        %662 = vmatprep.subr.mxu0 0.0
        %663 = vmatpush1.msra.mxu0 0.0
        %664 = vmatprep.subr.mxu0 0.0
        %665 = vmatpush1.msra.mxu0 0.0
        %666 = vmatprep.subr.mxu0 0.0
        %667 = vmatpush1.msra.mxu0 0.0
        %668 = vmatprep.subr.mxu0 0.0
        %669 = vmatpush1.msra.mxu0 0.0
        %670 = vmatprep.subr.mxu0 0.0
        %671 = vmatpush1.msra.mxu0 0.0
        %672 = vmatprep.mubr.f32.mxu0 0.0
        %673 = vmatmul.mubr.f32.gmra.mrb[0].mxu0 %v606
        %v674 = vpop.f32.mrb[0].mxu0
        %v675 = vadd.f32 %v603, %v674
        %v676 = vpop.f32.mrb[0].mxu0
        %677 = vdwg.mxu0
        %v678 = vld [vmem:[#allocation11] sm:$0xff]
        %v679 = vld [vmem:[#allocation11 + $0x8] sm:$0xff]
        %v680 = vld [vmem:[#allocation11 + $0x10] sm:$0xff]
        %v681 = vld [vmem:[#allocation11 + $0x18] sm:$0xff]
        %v683 = vsel %vm520, %v591, 0
        %685 = vmatprep.subr.mxu0 0.0
        %686 = vmatpush1.msra.mxu0 %v678
        %687 = vmatprep.subr.mxu0 0.0
        %688 = vmatpush1.msra.mxu0 %v679
        %689 = vmatprep.subr.mxu0 0.0
        %690 = vmatpush1.msra.mxu0 %v680
        %691 = vmatprep.subr.mxu0 0.0
        %692 = vmatpush1.msra.mxu0 %v681
        %693 = vmatprep.subr.mxu0 0.0
        %694 = vmatpush1.msra.mxu0 0.0
        %695 = vmatprep.subr.mxu0 0.0
        %696 = vmatpush1.msra.mxu0 0.0
        %697 = vmatprep.subr.mxu0 0.0
        %698 = vmatpush1.msra.mxu0 0.0
        %699 = vmatprep.subr.mxu0 0.0
        %700 = vmatpush1.msra.mxu0 0.0
        %701 = vmatprep.subr.mxu0 0.0
        %702 = vmatpush1.msra.mxu0 0.0
        %703 = vmatprep.subr.mxu0 0.0
        %704 = vmatpush1.msra.mxu0 0.0
        %705 = vmatprep.subr.mxu0 0.0
        %706 = vmatpush1.msra.mxu0 0.0
        %707 = vmatprep.subr.mxu0 0.0
        %708 = vmatpush1.msra.mxu0 0.0
        %709 = vmatprep.subr.mxu0 0.0
        %710 = vmatpush1.msra.mxu0 0.0
        %711 = vmatprep.subr.mxu0 0.0
        %712 = vmatpush1.msra.mxu0 0.0
        %713 = vmatprep.subr.mxu0 0.0
        %714 = vmatpush1.msra.mxu0 0.0
        %715 = vmatprep.subr.mxu0 0.0
        %716 = vmatpush1.msra.mxu0 0.0
        %717 = vmatprep.subr.mxu0 0.0
        %718 = vmatpush1.msra.mxu0 0.0
        %719 = vmatprep.subr.mxu0 0.0
        %720 = vmatpush1.msra.mxu0 0.0
        %721 = vmatprep.subr.mxu0 0.0
        %722 = vmatpush1.msra.mxu0 0.0
        %723 = vmatprep.subr.mxu0 0.0
        %724 = vmatpush1.msra.mxu0 0.0
        %725 = vmatprep.subr.mxu0 0.0
        %726 = vmatpush1.msra.mxu0 0.0
        %727 = vmatprep.subr.mxu0 0.0
        %728 = vmatpush1.msra.mxu0 0.0
        %729 = vmatprep.subr.mxu0 0.0
        %730 = vmatpush1.msra.mxu0 0.0
        %731 = vmatprep.subr.mxu0 0.0
        %732 = vmatpush1.msra.mxu0 0.0
        %733 = vmatprep.subr.mxu0 0.0
        %734 = vmatpush1.msra.mxu0 0.0
        %735 = vmatprep.subr.mxu0 0.0
        %736 = vmatpush1.msra.mxu0 0.0
        %737 = vmatprep.subr.mxu0 0.0
        %738 = vmatpush1.msra.mxu0 0.0
        %739 = vmatprep.subr.mxu0 0.0
        %740 = vmatpush1.msra.mxu0 0.0
        %741 = vmatprep.subr.mxu0 0.0
        %742 = vmatpush1.msra.mxu0 0.0
        %743 = vmatprep.subr.mxu0 0.0
        %744 = vmatpush1.msra.mxu0 0.0
        %745 = vmatprep.subr.mxu0 0.0
        %746 = vmatpush1.msra.mxu0 0.0
        %747 = vmatprep.subr.mxu0 0.0
        %748 = vmatpush1.msra.mxu0 0.0
        %749 = vmatprep.mubr.f32.mxu0 0.0
        %750 = vmatmul.mubr.f32.gmra.mrb[0].mxu0 %v683
        %v751 = vpop.f32.mrb[0].mxu0
        %v752 = vadd.f32 0.0, %v751
        %v753 = vpop.f32.mrb[0].mxu0
        %754 = vdwg.mxu0
        %v755 = vld [vmem:[#allocation8] sm:$0xff]
        %v756 = vmul.f32 %v591, %v755
        %v757 = vld [vmem:[#allocation9] sm:$0xff]
        %v758 = vmul.f32 %v752, %v757
        %v759 = vadd.f32 %v756, %v758
        %vm760 = vcmask 64512
        %v762 = vsel %vm760, %v759, 0
        %v765 = vsel %vm760, %v675, 0
        %767 = vmatprep.subr.mxu0 0.0
        %768 = vmatpush1.xpose.msra.mxu0 %v765
        %769 = vmatprep.subr.mxu0 0.0
        %770 = vmatpush1.xpose.msra.mxu0 0.0
        %771 = vmatprep.subr.mxu0 0.0
        %772 = vmatpush1.xpose.msra.mxu0 0.0
        %773 = vmatprep.subr.mxu0 0.0
        %774 = vmatpush1.xpose.msra.mxu0 0.0
        %775 = vmatprep.subr.mxu0 0.0
        %776 = vmatpush1.xpose.msra.mxu0 0.0
        %777 = vmatprep.subr.mxu0 0.0
        %778 = vmatpush1.xpose.msra.mxu0 0.0
        %779 = vmatprep.subr.mxu0 0.0
        %780 = vmatpush1.xpose.msra.mxu0 0.0
        %781 = vmatprep.subr.mxu0 0.0
        %782 = vmatpush1.xpose.msra.mxu0 0.0
        %783 = vmatprep.subr.mxu0 0.0
        %784 = vmatpush1.xpose.msra.mxu0 0.0
        %785 = vmatprep.subr.mxu0 0.0
        %786 = vmatpush1.xpose.msra.mxu0 0.0
        %787 = vmatprep.subr.mxu0 0.0
        %788 = vmatpush1.xpose.msra.mxu0 0.0
        %789 = vmatprep.subr.mxu0 0.0
        %790 = vmatpush1.xpose.msra.mxu0 0.0
        %791 = vmatprep.subr.mxu0 0.0
        %792 = vmatpush1.xpose.msra.mxu0 0.0
        %793 = vmatprep.subr.mxu0 0.0
        %794 = vmatpush1.xpose.msra.mxu0 0.0
        %795 = vmatprep.subr.mxu0 0.0
        %796 = vmatpush1.xpose.msra.mxu0 0.0
        %797 = vmatprep.subr.mxu0 0.0
        %798 = vmatpush1.xpose.msra.mxu0 0.0
        %799 = vmatprep.subr.mxu0 0.0
        %800 = vmatpush1.xpose.msra.mxu0 0.0
        %801 = vmatprep.subr.mxu0 0.0
        %802 = vmatpush1.xpose.msra.mxu0 0.0
        %803 = vmatprep.subr.mxu0 0.0
        %804 = vmatpush1.xpose.msra.mxu0 0.0
        %805 = vmatprep.subr.mxu0 0.0
        %806 = vmatpush1.xpose.msra.mxu0 0.0
        %807 = vmatprep.subr.mxu0 0.0
        %808 = vmatpush1.xpose.msra.mxu0 0.0
        %809 = vmatprep.subr.mxu0 0.0
        %810 = vmatpush1.xpose.msra.mxu0 0.0
        %811 = vmatprep.subr.mxu0 0.0
        %812 = vmatpush1.xpose.msra.mxu0 0.0
        %813 = vmatprep.subr.mxu0 0.0
        %814 = vmatpush1.xpose.msra.mxu0 0.0
        %815 = vmatprep.subr.mxu0 0.0
        %816 = vmatpush1.xpose.msra.mxu0 0.0
        %817 = vmatprep.subr.mxu0 0.0
        %818 = vmatpush1.xpose.msra.mxu0 0.0
        %819 = vmatprep.subr.mxu0 0.0
        %820 = vmatpush1.xpose.msra.mxu0 0.0
        %821 = vmatprep.subr.mxu0 0.0
        %822 = vmatpush1.xpose.msra.mxu0 0.0
        %823 = vmatprep.subr.mxu0 0.0
        %824 = vmatpush1.xpose.msra.mxu0 0.0
        %825 = vmatprep.subr.mxu0 0.0
        %826 = vmatpush1.xpose.msra.mxu0 0.0
        %827 = vmatprep.subr.mxu0 0.0
        %828 = vmatpush1.xpose.msra.mxu0 0.0
        %829 = vmatprep.subr.mxu0 0.0
        %830 = vmatpush1.xpose.msra.mxu0 0.0
        %831 = vmatprep.mubr.f32.mxu0 0.0
        %832 = vmatmul.mubr.f32.gmra.mrb[0].mxu0 %v762
        %v833 = vpop.f32.mrb[0].mxu0
        %v834 = vadd.f32 0.0, %v833
        %v835 = vpop.f32.mrb[0].mxu0
        %836 = vdwg.mxu0
        %v837 = vsel %vm760, %v834, -inf
        %838 = vmax.xlane.f32.xlu0 %v837
        %v839 = vpop.xlane.xlu0 %838
        %v840 = vsub.f32 %v834, %v839
        %v841 = vmul.f32 %v840, 1.442695
        %v842 = vpow.pop %v841
        %v843 = vsel %vm760, %v842, 0.0
        %844 = vadd.xlane.f32.xlu0 %v843
        %v845 = vpop.xlane.xlu0 %844
        %v846 = vrcp.pop %v845
        %v847 = vmul.f32 %v842, %v846
        %v849 = vsel %vm760, %v847, 0
        %851 = vmatprep.subr.mxu0 0.0
        %852 = vmatpush1.msra.mxu0 %v675
        %853 = vmatprep.subr.mxu0 0.0
        %854 = vmatpush1.msra.mxu0 0.0
        %855 = vmatprep.subr.mxu0 0.0
        %856 = vmatpush1.msra.mxu0 0.0
        %857 = vmatprep.subr.mxu0 0.0
        %858 = vmatpush1.msra.mxu0 0.0
        %859 = vmatprep.subr.mxu0 0.0
        %860 = vmatpush1.msra.mxu0 0.0
        %861 = vmatprep.subr.mxu0 0.0
        %862 = vmatpush1.msra.mxu0 0.0
        %863 = vmatprep.subr.mxu0 0.0
        %864 = vmatpush1.msra.mxu0 0.0
        %865 = vmatprep.subr.mxu0 0.0
        %866 = vmatpush1.msra.mxu0 0.0
        %867 = vmatprep.subr.mxu0 0.0
        %868 = vmatpush1.msra.mxu0 0.0
        %869 = vmatprep.subr.mxu0 0.0
        %870 = vmatpush1.msra.mxu0 0.0
        %871 = vmatprep.subr.mxu0 0.0
        %872 = vmatpush1.msra.mxu0 0.0
        %873 = vmatprep.subr.mxu0 0.0
        %874 = vmatpush1.msra.mxu0 0.0
        %875 = vmatprep.subr.mxu0 0.0
        %876 = vmatpush1.msra.mxu0 0.0
        %877 = vmatprep.subr.mxu0 0.0
        %878 = vmatpush1.msra.mxu0 0.0
        %879 = vmatprep.subr.mxu0 0.0
        %880 = vmatpush1.msra.mxu0 0.0
        %881 = vmatprep.subr.mxu0 0.0
        %882 = vmatpush1.msra.mxu0 0.0
        %883 = vmatprep.subr.mxu0 0.0
        %884 = vmatpush1.msra.mxu0 0.0
        %885 = vmatprep.subr.mxu0 0.0
        %886 = vmatpush1.msra.mxu0 0.0
        %887 = vmatprep.subr.mxu0 0.0
        %888 = vmatpush1.msra.mxu0 0.0
        %889 = vmatprep.subr.mxu0 0.0
        %890 = vmatpush1.msra.mxu0 0.0
        %891 = vmatprep.subr.mxu0 0.0
        %892 = vmatpush1.msra.mxu0 0.0
        %893 = vmatprep.subr.mxu0 0.0
        %894 = vmatpush1.msra.mxu0 0.0
        %895 = vmatprep.subr.mxu0 0.0
        %896 = vmatpush1.msra.mxu0 0.0
        %897 = vmatprep.subr.mxu0 0.0
        %898 = vmatpush1.msra.mxu0 0.0
        %899 = vmatprep.subr.mxu0 0.0
        %900 = vmatpush1.msra.mxu0 0.0
        %901 = vmatprep.subr.mxu0 0.0
        %902 = vmatpush1.msra.mxu0 0.0
        %903 = vmatprep.subr.mxu0 0.0
        %904 = vmatpush1.msra.mxu0 0.0
        %905 = vmatprep.subr.mxu0 0.0
        %906 = vmatpush1.msra.mxu0 0.0
        %907 = vmatprep.subr.mxu0 0.0
        %908 = vmatpush1.msra.mxu0 0.0
        %909 = vmatprep.subr.mxu0 0.0
        %910 = vmatpush1.msra.mxu0 0.0
        %911 = vmatprep.subr.mxu0 0.0
        %912 = vmatpush1.msra.mxu0 0.0
        %913 = vmatprep.subr.mxu0 0.0
        %914 = vmatpush1.msra.mxu0 0.0
        %915 = vmatprep.mubr.f32.mxu0 0.0
        %916 = vmatmul.mubr.f32.gmra.mrb[0].mxu0 %v849
        %v917 = vpop.f32.mrb[0].mxu0
        %v918 = vadd.f32 0.0, %v917
        %v919 = vpop.f32.mrb[0].mxu0
        %920 = vdwg.mxu0
        %921 = vst.msk [vmem:[#allocation2] sm:$0xff] %vm760, %v918
        %922 = vrot.lane.b32.xlu0 %v759, 120
        %v923 = vpop.permute.xlu0 %922
        %924 = vrot.lane.b32.xlu0 %v675, 120
        %v925 = vpop.permute.xlu0 %924
        %v926 = vsel %vm760, %v923, 0
        %v928 = vsel %vm760, %v925, 0
        %930 = vmatprep.subr.mxu0 0.0
        %931 = vmatpush1.xpose.msra.mxu0 %v928
        %932 = vmatprep.subr.mxu0 0.0
        %933 = vmatpush1.xpose.msra.mxu0 0.0
        %934 = vmatprep.subr.mxu0 0.0
        %935 = vmatpush1.xpose.msra.mxu0 0.0
        %936 = vmatprep.subr.mxu0 0.0
        %937 = vmatpush1.xpose.msra.mxu0 0.0
        %938 = vmatprep.subr.mxu0 0.0
        %939 = vmatpush1.xpose.msra.mxu0 0.0
        %940 = vmatprep.subr.mxu0 0.0
        %941 = vmatpush1.xpose.msra.mxu0 0.0
        %942 = vmatprep.subr.mxu0 0.0
        %943 = vmatpush1.xpose.msra.mxu0 0.0
        %944 = vmatprep.subr.mxu0 0.0
        %945 = vmatpush1.xpose.msra.mxu0 0.0
        %946 = vmatprep.subr.mxu0 0.0
        %947 = vmatpush1.xpose.msra.mxu0 0.0
        %948 = vmatprep.subr.mxu0 0.0
        %949 = vmatpush1.xpose.msra.mxu0 0.0
        %950 = vmatprep.subr.mxu0 0.0
        %951 = vmatpush1.xpose.msra.mxu0 0.0
        %952 = vmatprep.subr.mxu0 0.0
        %953 = vmatpush1.xpose.msra.mxu0 0.0
        %954 = vmatprep.subr.mxu0 0.0
        %955 = vmatpush1.xpose.msra.mxu0 0.0
        %956 = vmatprep.subr.mxu0 0.0
        %957 = vmatpush1.xpose.msra.mxu0 0.0
        %958 = vmatprep.subr.mxu0 0.0
        %959 = vmatpush1.xpose.msra.mxu0 0.0
        %960 = vmatprep.subr.mxu0 0.0
        %961 = vmatpush1.xpose.msra.mxu0 0.0
        %962 = vmatprep.subr.mxu0 0.0
        %963 = vmatpush1.xpose.msra.mxu0 0.0
        %964 = vmatprep.subr.mxu0 0.0
        %965 = vmatpush1.xpose.msra.mxu0 0.0
        %966 = vmatprep.subr.mxu0 0.0
        %967 = vmatpush1.xpose.msra.mxu0 0.0
        %968 = vmatprep.subr.mxu0 0.0
        %969 = vmatpush1.xpose.msra.mxu0 0.0
        %970 = vmatprep.subr.mxu0 0.0
        %971 = vmatpush1.xpose.msra.mxu0 0.0
        %972 = vmatprep.subr.mxu0 0.0
        %973 = vmatpush1.xpose.msra.mxu0 0.0
        %974 = vmatprep.subr.mxu0 0.0
        %975 = vmatpush1.xpose.msra.mxu0 0.0
        %976 = vmatprep.subr.mxu0 0.0
        %977 = vmatpush1.xpose.msra.mxu0 0.0
        %978 = vmatprep.subr.mxu0 0.0
        %979 = vmatpush1.xpose.msra.mxu0 0.0
        %980 = vmatprep.subr.mxu0 0.0
        %981 = vmatpush1.xpose.msra.mxu0 0.0
        %982 = vmatprep.subr.mxu0 0.0
        %983 = vmatpush1.xpose.msra.mxu0 0.0
        %984 = vmatprep.subr.mxu0 0.0
        %985 = vmatpush1.xpose.msra.mxu0 0.0
        %986 = vmatprep.subr.mxu0 0.0
        %987 = vmatpush1.xpose.msra.mxu0 0.0
        %988 = vmatprep.subr.mxu0 0.0
        %989 = vmatpush1.xpose.msra.mxu0 0.0
        %990 = vmatprep.subr.mxu0 0.0
        %991 = vmatpush1.xpose.msra.mxu0 0.0
        %992 = vmatprep.subr.mxu0 0.0
        %993 = vmatpush1.xpose.msra.mxu0 0.0
        %994 = vmatprep.mubr.f32.mxu0 0.0
        %995 = vmatmul.mubr.f32.gmra.mrb[0].mxu0 %v926
        %v996 = vpop.f32.mrb[0].mxu0
        %v997 = vadd.f32 0.0, %v996
        %v998 = vpop.f32.mrb[0].mxu0
        %999 = vdwg.mxu0
        %v1000 = vsel %vm760, %v997, -inf
        %1001 = vmax.xlane.f32.xlu0 %v1000
        %v1002 = vpop.xlane.xlu0 %1001
        %v1003 = vsub.f32 %v997, %v1002
        %v1004 = vmul.f32 %v1003, 1.442695
        %v1005 = vpow.pop %v1004
        %v1006 = vsel %vm760, %v1005, 0.0
        %1007 = vadd.xlane.f32.xlu0 %v1006
        %v1008 = vpop.xlane.xlu0 %1007
        %v1009 = vrcp.pop %v1008
        %v1010 = vmul.f32 %v1005, %v1009
        %v1013 = vsel %vm760, %v1010, 0
        %1015 = vmatprep.subr.mxu0 0.0
        %1016 = vmatpush1.msra.mxu0 %v925
        %1017 = vmatprep.subr.mxu0 0.0
        %1018 = vmatpush1.msra.mxu0 0.0
        %1019 = vmatprep.subr.mxu0 0.0
        %1020 = vmatpush1.msra.mxu0 0.0
        %1021 = vmatprep.subr.mxu0 0.0
        %1022 = vmatpush1.msra.mxu0 0.0
        %1023 = vmatprep.subr.mxu0 0.0
        %1024 = vmatpush1.msra.mxu0 0.0
        %1025 = vmatprep.subr.mxu0 0.0
        %1026 = vmatpush1.msra.mxu0 0.0
        %1027 = vmatprep.subr.mxu0 0.0
        %1028 = vmatpush1.msra.mxu0 0.0
        %1029 = vmatprep.subr.mxu0 0.0
        %1030 = vmatpush1.msra.mxu0 0.0
        %1031 = vmatprep.subr.mxu0 0.0
        %1032 = vmatpush1.msra.mxu0 0.0
        %1033 = vmatprep.subr.mxu0 0.0
        %1034 = vmatpush1.msra.mxu0 0.0
        %1035 = vmatprep.subr.mxu0 0.0
        %1036 = vmatpush1.msra.mxu0 0.0
        %1037 = vmatprep.subr.mxu0 0.0
        %1038 = vmatpush1.msra.mxu0 0.0
        %1039 = vmatprep.subr.mxu0 0.0
        %1040 = vmatpush1.msra.mxu0 0.0
        %1041 = vmatprep.subr.mxu0 0.0
        %1042 = vmatpush1.msra.mxu0 0.0
        %1043 = vmatprep.subr.mxu0 0.0
        %1044 = vmatpush1.msra.mxu0 0.0
        %1045 = vmatprep.subr.mxu0 0.0
        %1046 = vmatpush1.msra.mxu0 0.0
        %1047 = vmatprep.subr.mxu0 0.0
        %1048 = vmatpush1.msra.mxu0 0.0
        %1049 = vmatprep.subr.mxu0 0.0
        %1050 = vmatpush1.msra.mxu0 0.0
        %1051 = vmatprep.subr.mxu0 0.0
        %1052 = vmatpush1.msra.mxu0 0.0
        %1053 = vmatprep.subr.mxu0 0.0
        %1054 = vmatpush1.msra.mxu0 0.0
        %1055 = vmatprep.subr.mxu0 0.0
        %1056 = vmatpush1.msra.mxu0 0.0
        %1057 = vmatprep.subr.mxu0 0.0
        %1058 = vmatpush1.msra.mxu0 0.0
        %1059 = vmatprep.subr.mxu0 0.0
        %1060 = vmatpush1.msra.mxu0 0.0
        %1061 = vmatprep.subr.mxu0 0.0
        %1062 = vmatpush1.msra.mxu0 0.0
        %1063 = vmatprep.subr.mxu0 0.0
        %1064 = vmatpush1.msra.mxu0 0.0
        %1065 = vmatprep.subr.mxu0 0.0
        %1066 = vmatpush1.msra.mxu0 0.0
        %1067 = vmatprep.subr.mxu0 0.0
        %1068 = vmatpush1.msra.mxu0 0.0
        %1069 = vmatprep.subr.mxu0 0.0
        %1070 = vmatpush1.msra.mxu0 0.0
        %1071 = vmatprep.subr.mxu0 0.0
        %1072 = vmatpush1.msra.mxu0 0.0
        %1073 = vmatprep.subr.mxu0 0.0
        %1074 = vmatpush1.msra.mxu0 0.0
        %1075 = vmatprep.subr.mxu0 0.0
        %1076 = vmatpush1.msra.mxu0 0.0
        %1077 = vmatprep.subr.mxu0 0.0
        %1078 = vmatpush1.msra.mxu0 0.0
        %1079 = vmatprep.mubr.f32.mxu0 0.0
        %1080 = vmatmul.mubr.f32.gmra.mrb[0].mxu0 %v1013
        %v1081 = vpop.f32.mrb[0].mxu0
        %v1082 = vadd.f32 0.0, %v1081
        %v1083 = vpop.f32.mrb[0].mxu0
        %1084 = vdwg.mxu0
        %1086 = vrot.lane.b32.xlu0 %v1082, 8
        %v1087 = vpop.permute.xlu0 %1086
        %vm1089 = vcmask 130112
        %1090 = vst.msk [vmem:[#allocation2] sm:$0xff] %vm1089, %v1087
        %1091 = vrot.lane.b32.xlu0 %v759, 112
        %v1092 = vpop.permute.xlu0 %1091
        %1093 = vrot.lane.b32.xlu0 %v675, 112
        %v1094 = vpop.permute.xlu0 %1093
        %v1095 = vsel %vm760, %v1092, 0
        %v1097 = vsel %vm760, %v1094, 0
        %1099 = vmatprep.subr.mxu0 0.0
        %1100 = vmatpush1.xpose.msra.mxu0 %v1097
        %1101 = vmatprep.subr.mxu0 0.0
        %1102 = vmatpush1.xpose.msra.mxu0 0.0
        %1103 = vmatprep.subr.mxu0 0.0
        %1104 = vmatpush1.xpose.msra.mxu0 0.0
        %1105 = vmatprep.subr.mxu0 0.0
        %1106 = vmatpush1.xpose.msra.mxu0 0.0
        %1107 = vmatprep.subr.mxu0 0.0
        %1108 = vmatpush1.xpose.msra.mxu0 0.0
        %1109 = vmatprep.subr.mxu0 0.0
        %1110 = vmatpush1.xpose.msra.mxu0 0.0
        %1111 = vmatprep.subr.mxu0 0.0
        %1112 = vmatpush1.xpose.msra.mxu0 0.0
        %1113 = vmatprep.subr.mxu0 0.0
        %1114 = vmatpush1.xpose.msra.mxu0 0.0
        %1115 = vmatprep.subr.mxu0 0.0
        %1116 = vmatpush1.xpose.msra.mxu0 0.0
        %1117 = vmatprep.subr.mxu0 0.0
        %1118 = vmatpush1.xpose.msra.mxu0 0.0
        %1119 = vmatprep.subr.mxu0 0.0
        %1120 = vmatpush1.xpose.msra.mxu0 0.0
        %1121 = vmatprep.subr.mxu0 0.0
        %1122 = vmatpush1.xpose.msra.mxu0 0.0
        %1123 = vmatprep.subr.mxu0 0.0
        %1124 = vmatpush1.xpose.msra.mxu0 0.0
        %1125 = vmatprep.subr.mxu0 0.0
        %1126 = vmatpush1.xpose.msra.mxu0 0.0
        %1127 = vmatprep.subr.mxu0 0.0
        %1128 = vmatpush1.xpose.msra.mxu0 0.0
        %1129 = vmatprep.subr.mxu0 0.0
        %1130 = vmatpush1.xpose.msra.mxu0 0.0
        %1131 = vmatprep.subr.mxu0 0.0
        %1132 = vmatpush1.xpose.msra.mxu0 0.0
        %1133 = vmatprep.subr.mxu0 0.0
        %1134 = vmatpush1.xpose.msra.mxu0 0.0
        %1135 = vmatprep.subr.mxu0 0.0
        %1136 = vmatpush1.xpose.msra.mxu0 0.0
        %1137 = vmatprep.subr.mxu0 0.0
        %1138 = vmatpush1.xpose.msra.mxu0 0.0
        %1139 = vmatprep.subr.mxu0 0.0
        %1140 = vmatpush1.xpose.msra.mxu0 0.0
        %1141 = vmatprep.subr.mxu0 0.0
        %1142 = vmatpush1.xpose.msra.mxu0 0.0
        %1143 = vmatprep.subr.mxu0 0.0
        %1144 = vmatpush1.xpose.msra.mxu0 0.0
        %1145 = vmatprep.subr.mxu0 0.0
        %1146 = vmatpush1.xpose.msra.mxu0 0.0
        %1147 = vmatprep.subr.mxu0 0.0
        %1148 = vmatpush1.xpose.msra.mxu0 0.0
        %1149 = vmatprep.subr.mxu0 0.0
        %1150 = vmatpush1.xpose.msra.mxu0 0.0
        %1151 = vmatprep.subr.mxu0 0.0
        %1152 = vmatpush1.xpose.msra.mxu0 0.0
        %1153 = vmatprep.subr.mxu0 0.0
        %1154 = vmatpush1.xpose.msra.mxu0 0.0
        %1155 = vmatprep.subr.mxu0 0.0
        %1156 = vmatpush1.xpose.msra.mxu0 0.0
        %1157 = vmatprep.subr.mxu0 0.0
        %1158 = vmatpush1.xpose.msra.mxu0 0.0
        %1159 = vmatprep.subr.mxu0 0.0
        %1160 = vmatpush1.xpose.msra.mxu0 0.0
        %1161 = vmatprep.subr.mxu0 0.0
        %1162 = vmatpush1.xpose.msra.mxu0 0.0
        %1163 = vmatprep.mubr.f32.mxu0 0.0
        %1164 = vmatmul.mubr.f32.gmra.mrb[0].mxu0 %v1095
        %v1165 = vpop.f32.mrb[0].mxu0
        %v1166 = vadd.f32 0.0, %v1165
        %v1167 = vpop.f32.mrb[0].mxu0
        %1168 = vdwg.mxu0
        %v1169 = vsel %vm760, %v1166, -inf
        %1170 = vmax.xlane.f32.xlu0 %v1169
        %v1171 = vpop.xlane.xlu0 %1170
        %v1172 = vsub.f32 %v1166, %v1171
        %v1173 = vmul.f32 %v1172, 1.442695
        %v1174 = vpow.pop %v1173
        %v1175 = vsel %vm760, %v1174, 0.0
        %1176 = vadd.xlane.f32.xlu0 %v1175
        %v1177 = vpop.xlane.xlu0 %1176
        %v1178 = vrcp.pop %v1177
        %v1179 = vmul.f32 %v1174, %v1178
        %v1182 = vsel %vm760, %v1179, 0
        %1184 = vmatprep.subr.mxu0 0.0
        %1185 = vmatpush1.msra.mxu0 %v1094
        %1186 = vmatprep.subr.mxu0 0.0
        %1187 = vmatpush1.msra.mxu0 0.0
        %1188 = vmatprep.subr.mxu0 0.0
        %1189 = vmatpush1.msra.mxu0 0.0
        %1190 = vmatprep.subr.mxu0 0.0
        %1191 = vmatpush1.msra.mxu0 0.0
        %1192 = vmatprep.subr.mxu0 0.0
        %1193 = vmatpush1.msra.mxu0 0.0
        %1194 = vmatprep.subr.mxu0 0.0
        %1195 = vmatpush1.msra.mxu0 0.0
        %1196 = vmatprep.subr.mxu0 0.0
        %1197 = vmatpush1.msra.mxu0 0.0
        %1198 = vmatprep.subr.mxu0 0.0
        %1199 = vmatpush1.msra.mxu0 0.0
        %1200 = vmatprep.subr.mxu0 0.0
        %1201 = vmatpush1.msra.mxu0 0.0
        %1202 = vmatprep.subr.mxu0 0.0
        %1203 = vmatpush1.msra.mxu0 0.0
        %1204 = vmatprep.subr.mxu0 0.0
        %1205 = vmatpush1.msra.mxu0 0.0
        %1206 = vmatprep.subr.mxu0 0.0
        %1207 = vmatpush1.msra.mxu0 0.0
        %1208 = vmatprep.subr.mxu0 0.0
        %1209 = vmatpush1.msra.mxu0 0.0
        %1210 = vmatprep.subr.mxu0 0.0
        %1211 = vmatpush1.msra.mxu0 0.0
        %1212 = vmatprep.subr.mxu0 0.0
        %1213 = vmatpush1.msra.mxu0 0.0
        %1214 = vmatprep.subr.mxu0 0.0
        %1215 = vmatpush1.msra.mxu0 0.0
        %1216 = vmatprep.subr.mxu0 0.0
        %1217 = vmatpush1.msra.mxu0 0.0
        %1218 = vmatprep.subr.mxu0 0.0
        %1219 = vmatpush1.msra.mxu0 0.0
        %1220 = vmatprep.subr.mxu0 0.0
        %1221 = vmatpush1.msra.mxu0 0.0
        %1222 = vmatprep.subr.mxu0 0.0
        %1223 = vmatpush1.msra.mxu0 0.0
        %1224 = vmatprep.subr.mxu0 0.0
        %1225 = vmatpush1.msra.mxu0 0.0
        %1226 = vmatprep.subr.mxu0 0.0
        %1227 = vmatpush1.msra.mxu0 0.0
        %1228 = vmatprep.subr.mxu0 0.0
        %1229 = vmatpush1.msra.mxu0 0.0
        %1230 = vmatprep.subr.mxu0 0.0
        %1231 = vmatpush1.msra.mxu0 0.0
        %1232 = vmatprep.subr.mxu0 0.0
        %1233 = vmatpush1.msra.mxu0 0.0
        %1234 = vmatprep.subr.mxu0 0.0
        %1235 = vmatpush1.msra.mxu0 0.0
        %1236 = vmatprep.subr.mxu0 0.0
        %1237 = vmatpush1.msra.mxu0 0.0
        %1238 = vmatprep.subr.mxu0 0.0
        %1239 = vmatpush1.msra.mxu0 0.0
        %1240 = vmatprep.subr.mxu0 0.0
        %1241 = vmatpush1.msra.mxu0 0.0
        %1242 = vmatprep.subr.mxu0 0.0
        %1243 = vmatpush1.msra.mxu0 0.0
        %1244 = vmatprep.subr.mxu0 0.0
        %1245 = vmatpush1.msra.mxu0 0.0
        %1246 = vmatprep.subr.mxu0 0.0
        %1247 = vmatpush1.msra.mxu0 0.0
        %1248 = vmatprep.mubr.f32.mxu0 0.0
        %1249 = vmatmul.mubr.f32.gmra.mrb[0].mxu0 %v1182
        %v1250 = vpop.f32.mrb[0].mxu0
        %v1251 = vadd.f32 0.0, %v1250
        %v1252 = vpop.f32.mrb[0].mxu0
        %1253 = vdwg.mxu0
        %1255 = vrot.lane.b32.xlu0 %v1251, 16
        %v1256 = vpop.permute.xlu0 %1255
        %vm1258 = vcmask 195712
        %1259 = vst.msk [vmem:[#allocation2] sm:$0xff] %vm1258, %v1256
        %1260 = vrot.lane.b32.xlu0 %v759, 104
        %v1261 = vpop.permute.xlu0 %1260
        %1262 = vrot.lane.b32.xlu0 %v675, 104
        %v1263 = vpop.permute.xlu0 %1262
        %v1264 = vsel %vm760, %v1261, 0
        %v1266 = vsel %vm760, %v1263, 0
        %1268 = vmatprep.subr.mxu0 0.0
        %1269 = vmatpush1.xpose.msra.mxu0 %v1266
        %1270 = vmatprep.subr.mxu0 0.0
        %1271 = vmatpush1.xpose.msra.mxu0 0.0
        %1272 = vmatprep.subr.mxu0 0.0
        %1273 = vmatpush1.xpose.msra.mxu0 0.0
        %1274 = vmatprep.subr.mxu0 0.0
        %1275 = vmatpush1.xpose.msra.mxu0 0.0
        %1276 = vmatprep.subr.mxu0 0.0
        %1277 = vmatpush1.xpose.msra.mxu0 0.0
        %1278 = vmatprep.subr.mxu0 0.0
        %1279 = vmatpush1.xpose.msra.mxu0 0.0
        %1280 = vmatprep.subr.mxu0 0.0
        %1281 = vmatpush1.xpose.msra.mxu0 0.0
        %1282 = vmatprep.subr.mxu0 0.0
        %1283 = vmatpush1.xpose.msra.mxu0 0.0
        %1284 = vmatprep.subr.mxu0 0.0
        %1285 = vmatpush1.xpose.msra.mxu0 0.0
        %1286 = vmatprep.subr.mxu0 0.0
        %1287 = vmatpush1.xpose.msra.mxu0 0.0
        %1288 = vmatprep.subr.mxu0 0.0
        %1289 = vmatpush1.xpose.msra.mxu0 0.0
        %1290 = vmatprep.subr.mxu0 0.0
        %1291 = vmatpush1.xpose.msra.mxu0 0.0
        %1292 = vmatprep.subr.mxu0 0.0
        %1293 = vmatpush1.xpose.msra.mxu0 0.0
        %1294 = vmatprep.subr.mxu0 0.0
        %1295 = vmatpush1.xpose.msra.mxu0 0.0
        %1296 = vmatprep.subr.mxu0 0.0
        %1297 = vmatpush1.xpose.msra.mxu0 0.0
        %1298 = vmatprep.subr.mxu0 0.0
        %1299 = vmatpush1.xpose.msra.mxu0 0.0
        %1300 = vmatprep.subr.mxu0 0.0
        %1301 = vmatpush1.xpose.msra.mxu0 0.0
        %1302 = vmatprep.subr.mxu0 0.0
        %1303 = vmatpush1.xpose.msra.mxu0 0.0
        %1304 = vmatprep.subr.mxu0 0.0
        %1305 = vmatpush1.xpose.msra.mxu0 0.0
        %1306 = vmatprep.subr.mxu0 0.0
        %1307 = vmatpush1.xpose.msra.mxu0 0.0
        %1308 = vmatprep.subr.mxu0 0.0
        %1309 = vmatpush1.xpose.msra.mxu0 0.0
        %1310 = vmatprep.subr.mxu0 0.0
        %1311 = vmatpush1.xpose.msra.mxu0 0.0
        %1312 = vmatprep.subr.mxu0 0.0
        %1313 = vmatpush1.xpose.msra.mxu0 0.0
        %1314 = vmatprep.subr.mxu0 0.0
        %1315 = vmatpush1.xpose.msra.mxu0 0.0
        %1316 = vmatprep.subr.mxu0 0.0
        %1317 = vmatpush1.xpose.msra.mxu0 0.0
        %1318 = vmatprep.subr.mxu0 0.0
        %1319 = vmatpush1.xpose.msra.mxu0 0.0
        %1320 = vmatprep.subr.mxu0 0.0
        %1321 = vmatpush1.xpose.msra.mxu0 0.0
        %1322 = vmatprep.subr.mxu0 0.0
        %1323 = vmatpush1.xpose.msra.mxu0 0.0
        %1324 = vmatprep.subr.mxu0 0.0
        %1325 = vmatpush1.xpose.msra.mxu0 0.0
        %1326 = vmatprep.subr.mxu0 0.0
        %1327 = vmatpush1.xpose.msra.mxu0 0.0
        %1328 = vmatprep.subr.mxu0 0.0
        %1329 = vmatpush1.xpose.msra.mxu0 0.0
        %1330 = vmatprep.subr.mxu0 0.0
        %1331 = vmatpush1.xpose.msra.mxu0 0.0
        %1332 = vmatprep.mubr.f32.mxu0 0.0
        %1333 = vmatmul.mubr.f32.gmra.mrb[0].mxu0 %v1264
        %v1334 = vpop.f32.mrb[0].mxu0
        %v1335 = vadd.f32 0.0, %v1334
        %v1336 = vpop.f32.mrb[0].mxu0
        %1337 = vdwg.mxu0
        %v1338 = vsel %vm760, %v1335, -inf
        %1339 = vmax.xlane.f32.xlu0 %v1338
        %v1340 = vpop.xlane.xlu0 %1339
        %v1341 = vsub.f32 %v1335, %v1340
        %v1342 = vmul.f32 %v1341, 1.442695
        %v1343 = vpow.pop %v1342
        %v1344 = vsel %vm760, %v1343, 0.0
        %1345 = vadd.xlane.f32.xlu0 %v1344
        %v1346 = vpop.xlane.xlu0 %1345
        %v1347 = vrcp.pop %v1346
        %v1348 = vmul.f32 %v1343, %v1347
        %v1351 = vsel %vm760, %v1348, 0
        %1353 = vmatprep.subr.mxu0 0.0
        %1354 = vmatpush1.msra.mxu0 %v1263
        %1355 = vmatprep.subr.mxu0 0.0
        %1356 = vmatpush1.msra.mxu0 0.0
        %1357 = vmatprep.subr.mxu0 0.0
        %1358 = vmatpush1.msra.mxu0 0.0
        %1359 = vmatprep.subr.mxu0 0.0
        %1360 = vmatpush1.msra.mxu0 0.0
        %1361 = vmatprep.subr.mxu0 0.0
        %1362 = vmatpush1.msra.mxu0 0.0
        %1363 = vmatprep.subr.mxu0 0.0
        %1364 = vmatpush1.msra.mxu0 0.0
        %1365 = vmatprep.subr.mxu0 0.0
        %1366 = vmatpush1.msra.mxu0 0.0
        %1367 = vmatprep.subr.mxu0 0.0
        %1368 = vmatpush1.msra.mxu0 0.0
        %1369 = vmatprep.subr.mxu0 0.0
        %1370 = vmatpush1.msra.mxu0 0.0
        %1371 = vmatprep.subr.mxu0 0.0
        %1372 = vmatpush1.msra.mxu0 0.0
        %1373 = vmatprep.subr.mxu0 0.0
        %1374 = vmatpush1.msra.mxu0 0.0
        %1375 = vmatprep.subr.mxu0 0.0
        %1376 = vmatpush1.msra.mxu0 0.0
        %1377 = vmatprep.subr.mxu0 0.0
        %1378 = vmatpush1.msra.mxu0 0.0
        %1379 = vmatprep.subr.mxu0 0.0
        %1380 = vmatpush1.msra.mxu0 0.0
        %1381 = vmatprep.subr.mxu0 0.0
        %1382 = vmatpush1.msra.mxu0 0.0
        %1383 = vmatprep.subr.mxu0 0.0
        %1384 = vmatpush1.msra.mxu0 0.0
        %1385 = vmatprep.subr.mxu0 0.0
        %1386 = vmatpush1.msra.mxu0 0.0
        %1387 = vmatprep.subr.mxu0 0.0
        %1388 = vmatpush1.msra.mxu0 0.0
        %1389 = vmatprep.subr.mxu0 0.0
        %1390 = vmatpush1.msra.mxu0 0.0
        %1391 = vmatprep.subr.mxu0 0.0
        %1392 = vmatpush1.msra.mxu0 0.0
        %1393 = vmatprep.subr.mxu0 0.0
        %1394 = vmatpush1.msra.mxu0 0.0
        %1395 = vmatprep.subr.mxu0 0.0
        %1396 = vmatpush1.msra.mxu0 0.0
        %1397 = vmatprep.subr.mxu0 0.0
        %1398 = vmatpush1.msra.mxu0 0.0
        %1399 = vmatprep.subr.mxu0 0.0
        %1400 = vmatpush1.msra.mxu0 0.0
        %1401 = vmatprep.subr.mxu0 0.0
        %1402 = vmatpush1.msra.mxu0 0.0
        %1403 = vmatprep.subr.mxu0 0.0
        %1404 = vmatpush1.msra.mxu0 0.0
        %1405 = vmatprep.subr.mxu0 0.0
        %1406 = vmatpush1.msra.mxu0 0.0
        %1407 = vmatprep.subr.mxu0 0.0
        %1408 = vmatpush1.msra.mxu0 0.0
        %1409 = vmatprep.subr.mxu0 0.0
        %1410 = vmatpush1.msra.mxu0 0.0
        %1411 = vmatprep.subr.mxu0 0.0
        %1412 = vmatpush1.msra.mxu0 0.0
        %1413 = vmatprep.subr.mxu0 0.0
        %1414 = vmatpush1.msra.mxu0 0.0
        %1415 = vmatprep.subr.mxu0 0.0
        %1416 = vmatpush1.msra.mxu0 0.0
        %1417 = vmatprep.mubr.f32.mxu0 0.0
        %1418 = vmatmul.mubr.f32.gmra.mrb[0].mxu0 %v1351
        %v1419 = vpop.f32.mrb[0].mxu0
        %v1420 = vadd.f32 0.0, %v1419
        %v1421 = vpop.f32.mrb[0].mxu0
        %1422 = vdwg.mxu0
        %1424 = vrot.lane.b32.xlu0 %v1420, 24
        %v1425 = vpop.permute.xlu0 %1424
        %vm1427 = vcmask 261312
        %1428 = vst.msk [vmem:[#allocation2] sm:$0xff] %vm1427, %v1425
        %v1429 = vld [vmem:[#allocation2] sm:$0xff]
        %v1430 = vld [vmem:[%s9] sm:$0xff]
        %v1431 = vld [vmem:[%s9 + $0x8] sm:$0xff]
        %v1432 = vld [vmem:[%s9 + $0x10] sm:$0xff]
        %v1433 = vld [vmem:[%s9 + $0x18] sm:$0xff]
        %v1434 = vld [vmem:[%s10] sm:$0x1]
        %v1436 = vlaneseq
        %v1437 = vshrl.u32 %v1436, 7
        %v1438 = vsub.s32 0, %v1437
        %v1439 = vrot.slane %v1434, %v1438
        %v1442 = vsel %vm520, %v1429, 0
        %1444 = vmatprep.subr.mxu0 0.0
        %1445 = vmatpush1.msra.mxu0 %v1430
        %1446 = vmatprep.subr.mxu0 0.0
        %1447 = vmatpush1.msra.mxu0 %v1431
        %1448 = vmatprep.subr.mxu0 0.0
        %1449 = vmatpush1.msra.mxu0 %v1432
        %1450 = vmatprep.subr.mxu0 0.0
        %1451 = vmatpush1.msra.mxu0 %v1433
        %1452 = vmatprep.subr.mxu0 0.0
        %1453 = vmatpush1.msra.mxu0 0.0
        %1454 = vmatprep.subr.mxu0 0.0
        %1455 = vmatpush1.msra.mxu0 0.0
        %1456 = vmatprep.subr.mxu0 0.0
        %1457 = vmatpush1.msra.mxu0 0.0
        %1458 = vmatprep.subr.mxu0 0.0
        %1459 = vmatpush1.msra.mxu0 0.0
        %1460 = vmatprep.subr.mxu0 0.0
        %1461 = vmatpush1.msra.mxu0 0.0
        %1462 = vmatprep.subr.mxu0 0.0
        %1463 = vmatpush1.msra.mxu0 0.0
        %1464 = vmatprep.subr.mxu0 0.0
        %1465 = vmatpush1.msra.mxu0 0.0
        %1466 = vmatprep.subr.mxu0 0.0
        %1467 = vmatpush1.msra.mxu0 0.0
        %1468 = vmatprep.subr.mxu0 0.0
        %1469 = vmatpush1.msra.mxu0 0.0
        %1470 = vmatprep.subr.mxu0 0.0
        %1471 = vmatpush1.msra.mxu0 0.0
        %1472 = vmatprep.subr.mxu0 0.0
        %1473 = vmatpush1.msra.mxu0 0.0
        %1474 = vmatprep.subr.mxu0 0.0
        %1475 = vmatpush1.msra.mxu0 0.0
        %1476 = vmatprep.subr.mxu0 0.0
        %1477 = vmatpush1.msra.mxu0 0.0
        %1478 = vmatprep.subr.mxu0 0.0
        %1479 = vmatpush1.msra.mxu0 0.0
        %1480 = vmatprep.subr.mxu0 0.0
        %1481 = vmatpush1.msra.mxu0 0.0
        %1482 = vmatprep.subr.mxu0 0.0
        %1483 = vmatpush1.msra.mxu0 0.0
        %1484 = vmatprep.subr.mxu0 0.0
        %1485 = vmatpush1.msra.mxu0 0.0
        %1486 = vmatprep.subr.mxu0 0.0
        %1487 = vmatpush1.msra.mxu0 0.0
        %1488 = vmatprep.subr.mxu0 0.0
        %1489 = vmatpush1.msra.mxu0 0.0
        %1490 = vmatprep.subr.mxu0 0.0
        %1491 = vmatpush1.msra.mxu0 0.0
        %1492 = vmatprep.subr.mxu0 0.0
        %1493 = vmatpush1.msra.mxu0 0.0
        %1494 = vmatprep.subr.mxu0 0.0
        %1495 = vmatpush1.msra.mxu0 0.0
        %1496 = vmatprep.subr.mxu0 0.0
        %1497 = vmatpush1.msra.mxu0 0.0
        %1498 = vmatprep.subr.mxu0 0.0
        %1499 = vmatpush1.msra.mxu0 0.0
        %1500 = vmatprep.subr.mxu0 0.0
        %1501 = vmatpush1.msra.mxu0 0.0
        %1502 = vmatprep.subr.mxu0 0.0
        %1503 = vmatpush1.msra.mxu0 0.0
        %1504 = vmatprep.subr.mxu0 0.0
        %1505 = vmatpush1.msra.mxu0 0.0
        %1506 = vmatprep.subr.mxu0 0.0
        %1507 = vmatpush1.msra.mxu0 0.0
        %1508 = vmatprep.mubr.f32.mxu0 0.0
        %1509 = vmatmul.mubr.f32.gmra.mrb[0].mxu0 %v1442
        %v1510 = vpop.f32.mrb[0].mxu0
        %v1511 = vadd.f32 %v1439, %v1510
        %v1512 = vpop.f32.mrb[0].mxu0
        %1513 = vdwg.mxu0
        %v1514 = vadd.f32 %v1511, %v507
        %1515 = vst.msk [vmem:[%s506] sm:$0xff] %vm520, %v1514
        %s1516 = sand.u32 %s282, 1
        %s1517 = scalar_lea.sflag [#allocation5], %s1516
        %s1518 = sand.u32 %s282, 1
        %s1519 = smul.addr %s1518, 8
        %s1520 = scalar_lea.vmem [#allocation15], %s1519
        // Predicated region
        $region93: #{tpu_custom_call.1} parent=63 // pred_check
          %p1521 = pneg %p292
        $region94: #{tpu_custom_call.1} parent=63 // pred_check_branch
          %1523 = sbr.rel (%p1521) target = $region96
        $region95: #{tpu_custom_call.1} parent=63 // pred_region
          %s1525 = ssub.s32 128, 128
          %1526 = vsyncadd %s1517, %s1525
          %s1527 = smul.addr %s33, 128
          %s1528 = scalar_lea.hbm %s11, %s1527
          %s1530 = sshll.u32 %s1520, 4
          %s1531 = int_to_ptr.vmem [resolvable:$true] %s1530
          %1533 = dma.vmem_to_hbm [thread:$0]  %s1531, 128, %s1528, %s1517
        $region96: #{tpu_custom_call.1} parent=63 // pred_fallthru
          _
      $region64: #{tpu_custom_call.1} parent=5 // pred_fallthru
        _
      %p1534 = scmp.le.s32.totalorder 2, %s28
      // Predicated region
      $region97: #{tpu_custom_call.1} parent=5 // pred_check
        %p1535 = pneg %p1534
      $region98: #{tpu_custom_call.1} parent=5 // pred_check_branch
        %1537 = sbr.rel (%p1535) target = $region100
      $region99: #{tpu_custom_call.1} parent=5 // pred_region
        %s1538 = ssub.s32 %s28, 2
        // Predicated region
        $region101: #{tpu_custom_call.1} parent=99 // pred_check
          %p1539 = pneg %p298
        $region102: #{tpu_custom_call.1} parent=99 // pred_check_branch
          %1541 = sbr.rel (%p1539) target = $region104
        $region103: #{tpu_custom_call.1} parent=99 // pred_region
          %s1542 = sand.u32 %s283, 1
          %s1543 = scalar_lea.sflag [#allocation5], %s1542
          %s1544 = sand.u32 %s283, 1
          %s1545 = smul.addr %s1544, 8
          %s1546 = scalar_lea.vmem [#allocation15], %s1545
          %1547 = dma.done %s1543, 128
        $region104: #{tpu_custom_call.1} parent=99 // pred_fallthru
          _
      $region100: #{tpu_custom_call.1} parent=5 // pred_fallthru
        _
    $region6: #{tpu_custom_call.1} parent=1 // loop_footer
      %s32 = sadd.s32 1, %s28
    $region7: #{tpu_custom_call.1} parent=1 // loop_footer_branch
      %27 = sbr.rel target = $region3
    $region8: #{tpu_custom_call.1} parent=1 // loop_exit
      _
    %1548 = vsyncpa [#allocation4], 1
    %s1549 = scalar_lea.sflag [#allocation4], 1
    %1550 = vsyncpa %s1549, 1
    %1551 = vsyncpa [#allocation7], 1
    %s1552 = scalar_lea.sflag [#allocation7], 1
    %1553 = vsyncpa %s1552, 1
    %1554 = vsyncpa [#allocation10], 1
    %1555 = vsyncpa [#allocation13], 1
    %1556 = vsyncpa [#allocation5], 1
    %s1557 = scalar_lea.sflag [#allocation5], 1
    %1558 = vsyncpa %s1557, 1

</llo_original>
